<compile_context>
chip_gen: v7x
topology: tpu7x:2x2x1
jax: 0.10.0
libtpu: 0.0.40
codegen_flags: <defaults>
</compile_context>

<pallas_src>
import math
from dataclasses import dataclass
from functools import partial

import jax
import jax.numpy as jnp
from jax.experimental import pallas as pl


# ----------------------------- config ---------------------------------------
@dataclass(frozen=True)
class BertConfig:
    vocab_size: int = 50
    hidden_size: int = 32
    num_heads: int = 4
    head_size: int = 8
    intermediate_size: int = 64
    num_layers: int = 2
    max_position_embeddings: int = 16
    type_vocab_size: int = 2
    layer_norm_eps: float = 1e-12
    dropout: float = 0.1   # unused at inference (identity)


# ----------------------------- shared math -----------------------------------
def _ln(x, g, b, eps):
    """Biased-variance LayerNorm over the last axis (matches torch.nn.LayerNorm)."""
    mu = jnp.mean(x, axis=-1, keepdims=True)
    var = jnp.mean((x - mu) ** 2, axis=-1, keepdims=True)
    return (x - mu) * jax.lax.rsqrt(var + eps) * g + b


def _gelu(x):
    """Exact (erf-based) GELU, matching torch.nn.functional.gelu default."""
    return 0.5 * x * (1.0 + jax.lax.erf(x * (1.0 / math.sqrt(2.0))))


# ----------------------------- Pallas kernels --------------------------------
def _layernorm_kernel(x_ref, g_ref, b_ref, o_ref, *, eps):
    o_ref[...] = _ln(x_ref[...], g_ref[...], b_ref[...], eps)


def layernorm(x2d, gamma_row, beta_row, eps):
    """x2d: (N, D); gamma_row/beta_row: (1, D)."""
    n, d = x2d.shape
    return pl.pallas_call(
        partial(_layernorm_kernel, eps=eps),
        out_shape=jax.ShapeDtypeStruct((n, d), jnp.float32),
    )(x2d, gamma_row, beta_row)


def _bert_layer_kernel(x_ref, mask_ref,
                       wqkv_ref, bqkv_ref, wo_ref, bo_ref,
                       ln1g_ref, ln1b_ref,
                       w1_ref, b1_ref, w2_ref, b2_ref,
                       ln2g_ref, ln2b_ref,
                       o_ref, *, num_heads, head_size, eps):
    """Whole transformer layer fused into one kernel.

    x_ref:    (N, D) activations, N = B*S
    mask_ref: (N, N) additive mask (padded keys: -10000, cross-batch: -1e9)
    wqkv_ref: (D, 3D) fused Q|K|V weight (already (Din, Dout) layout)
    wo_ref:   (D, D), w1_ref: (D, I), w2_ref: (I, D)
    biases:   (1, Dout);  LayerNorm gamma/beta: (1, D)
    """
    x = x_ref[...]                 # (N, D)
    mask = mask_ref[...]           # (N, N)
    n = x.shape[0]
    d = num_heads * head_size
    scale = 1.0 / math.sqrt(head_size)

    # Fused QKV projection: one matmul, one read of x.
    qkv = jnp.dot(x, wqkv_ref[...], preferred_element_type=jnp.float32) + bqkv_ref[...]

    # Per-head attention; output projection is accumulated per head so no
    # concatenate is needed:  concat_h(o_h) @ Wo == sum_h o_h @ Wo[h*hs:(h+1)*hs].
    wo = wo_ref[...]
    acc = jnp.zeros((n, d), jnp.float32)
    for h in range(num_heads):
        lo, hi = h * head_size, (h + 1) * head_size
        qh = qkv[:, lo:hi]
        kh = qkv[:, d + lo:d + hi]
        vh = qkv[:, 2 * d + lo:2 * d + hi]
        s = jax.lax.dot_general(qh, kh, (((1,), (1,)), ((), ())),
                                preferred_element_type=jnp.float32) * scale + mask
        s = s - jnp.max(s, axis=-1, keepdims=True)
        p = jnp.exp(s)
        p = p * pl.reciprocal(jnp.sum(p, axis=-1, keepdims=True), approx=True)
        oh = jnp.dot(p, vh, preferred_element_type=jnp.float32)          # (N, hs)
        acc = acc + jnp.dot(oh, wo[lo:hi, :], preferred_element_type=jnp.float32)
    attn = acc + bo_ref[...]

    # Residual + LayerNorm (post-LN BERT); dropout is identity at inference.
    x1 = _ln(x + attn, ln1g_ref[...], ln1b_ref[...], eps)

    # MLP with exact-erf GELU, residual + LayerNorm.
    h1 = jnp.dot(x1, w1_ref[...], preferred_element_type=jnp.float32) + b1_ref[...]
    h1 = _gelu(h1)
    h2 = jnp.dot(h1, w2_ref[...], preferred_element_type=jnp.float32) + b2_ref[...]
    o_ref[...] = _ln(x1 + h2, ln2g_ref[...], ln2b_ref[...], eps)


def bert_layer(x2d, full_mask, lp, cfg: BertConfig):
    n, d = x2d.shape
    return pl.pallas_call(
        partial(_bert_layer_kernel, num_heads=cfg.num_heads,
                head_size=cfg.head_size, eps=cfg.layer_norm_eps),
        out_shape=jax.ShapeDtypeStruct((n, d), jnp.float32),
    )(x2d, full_mask,
      lp["wqkv"], lp["bqkv"], lp["wo"], lp["bo"],
      lp["ln1_g"], lp["ln1_b"],
      lp["w1"], lp["b1"], lp["w2"], lp["b2"],
      lp["ln2_g"], lp["ln2_b"])


# ----------------------------- parameters ------------------------------------
def init_params(cfg: BertConfig, key):
    """Parameters in PyTorch nn.Linear layout: weight (out_features, in_features)."""
    keys = iter(jax.random.split(key, 256))

    def lin(dout, din):
        return {"w": jax.random.normal(next(keys), (dout, din), jnp.float32) * 0.02,
                "b": jnp.zeros((dout,), jnp.float32)}

    def ln(d):
        return {"g": jnp.ones((d,), jnp.float32), "b": jnp.zeros((d,), jnp.float32)}

    params = {
        "token_emb": jax.random.normal(next(keys), (cfg.vocab_size, cfg.hidden_size), jnp.float32) * 0.02,
        "pos_emb": jax.random.normal(next(keys), (cfg.max_position_embeddings, cfg.hidden_size), jnp.float32) * 0.02,
        "type_emb": jax.random.normal(next(keys), (cfg.type_vocab_size, cfg.hidden_size), jnp.float32) * 0.02,
        "emb_ln": ln(cfg.hidden_size),
        "layers": [],
        "star": lin(1, cfg.hidden_size),        # star_linear: hidden -> 1
        "sentiment": lin(2, cfg.hidden_size),   # sentiment_linear: hidden -> 2
    }
    for _ in range(cfg.num_layers):
        params["layers"].append({
            "q": lin(cfg.hidden_size, cfg.hidden_size),
            "k": lin(cfg.hidden_size, cfg.hidden_size),
            "v": lin(cfg.hidden_size, cfg.hidden_size),
            "o": lin(cfg.hidden_size, cfg.hidden_size),
            "attn_ln": ln(cfg.hidden_size),
            "mlp1": lin(cfg.intermediate_size, cfg.hidden_size),
            "mlp2": lin(cfg.hidden_size, cfg.intermediate_size),
            "mlp_ln": ln(cfg.hidden_size),
        })
    return params


def pack_params(params):
    """One-time repack: transpose weights to (Din, Dout), fuse QKV, fuse heads."""
    packed = {
        "token_emb": params["token_emb"],
        "pos_emb": params["pos_emb"],
        "type_emb": params["type_emb"],
        "emb_ln_g": params["emb_ln"]["g"].reshape(1, -1),
        "emb_ln_b": params["emb_ln"]["b"].reshape(1, -1),
        # classifier heads fused into one (D, 3) matrix: [star | sentiment]
        "head_w": jnp.concatenate([params["star"]["w"].T, params["sentiment"]["w"].T], axis=1),
        "head_b": jnp.concatenate([params["star"]["b"], params["sentiment"]["b"]]),
        "layers": [],
    }
    for lp in params["layers"]:
        packed["layers"].append({
            "wqkv": jnp.concatenate([lp["q"]["w"].T, lp["k"]["w"].T, lp["v"]["w"].T], axis=1),
            "bqkv": jnp.concatenate([lp["q"]["b"], lp["k"]["b"], lp["v"]["b"]]).reshape(1, -1),
            "wo": lp["o"]["w"].T, "bo": lp["o"]["b"].reshape(1, -1),
            "ln1_g": lp["attn_ln"]["g"].reshape(1, -1), "ln1_b": lp["attn_ln"]["b"].reshape(1, -1),
            "w1": lp["mlp1"]["w"].T, "b1": lp["mlp1"]["b"].reshape(1, -1),
            "w2": lp["mlp2"]["w"].T, "b2": lp["mlp2"]["b"].reshape(1, -1),
            "ln2_g": lp["mlp_ln"]["g"].reshape(1, -1), "ln2_b": lp["mlp_ln"]["b"].reshape(1, -1),
        })
    return packed


# ----------------------------- forward ---------------------------------------
def bert_classifier_forward(packed, cfg: BertConfig, input_ids, one_zero_attention_mask):
    B, S = input_ids.shape
    D = cfg.hidden_size
    N = B * S

    # --- BertCommon: embeddings (gathers stay in plain JAX glue) ---
    tok = jnp.take(packed["token_emb"], input_ids, axis=0)              # (B, S, D)
    pos = packed["pos_emb"][:S][None, :, :]                             # (1, S, D)
    typ = packed["type_emb"][0][None, None, :]                          # token_type_ids=None -> all zeros
    x = (tok + pos + typ).reshape(N, D)
    x = layernorm(x, packed["emb_ln_g"], packed["emb_ln_b"], cfg.layer_norm_eps)
    # dropout: identity at inference

    # Combined (N, N) additive attention mask shared by all layers/heads:
    #   * padded keys get -10000 (like make_additive_attention_mask)
    #   * cross-batch pairs get -1e9 (exp underflows to exactly 0), which makes
    #     the fused whole-block softmax identical to per-batch softmax.
    add_mask = (1.0 - one_zero_attention_mask.astype(jnp.float32)) * -10000.0   # (B, S)
    key_mask = add_mask.reshape(1, N)                                           # per key column
    batch_idx = jnp.arange(N, dtype=jnp.int32) // S
    same_batch = batch_idx[:, None] == batch_idx[None, :]
    full_mask = jnp.where(same_batch, key_mask, jnp.float32(-1e9))              # (N, N)

    # --- BertCommon: transformer blocks, one fused Pallas kernel per layer ---
    for lp in packed["layers"]:
        x = bert_layer(x, full_mask, lp, cfg)

    # --- classifier head: tiny (B,32)x(32,3) matmul, kept in plain JAX ---
    cls = x.reshape(B, S, D)[:, 0, :]                                   # (B, D)
    # TODO(synk): nn.Dropout is identity in eval mode; no stochastic masking applied.
    heads = cls @ packed["head_w"] + packed["head_b"]                   # (B, 3)
    star = heads[:, 0:1]                                                # (B, 1)
    sent = heads[:, 1:3]                                                # (B, 2)
    return {"is_positive": sent, "star_rating": 5.0 * star + 5.0}


# ----------------------------- main ------------------------------------------
if __name__ == "__main__":
    cfg = BertConfig()
    key = jax.random.PRNGKey(0)
    pkey, ikey = jax.random.split(key)

    params = init_params(cfg, pkey)
    packed = pack_params(params)          # one-time weight transpose / fusion

    B, S = 2, 8
    input_ids = jax.random.randint(ikey, (B, S), 0, cfg.vocab_size, dtype=jnp.int32)
    one_zero_attention_mask = jnp.ones((B, S), dtype=jnp.int32).at[1, 5:].set(0)

    fwd = jax.jit(lambda p, ids, m: bert_classifier_forward(p, cfg, ids, m))
    out = jax.block_until_ready(fwd(packed, input_ids, one_zero_attention_mask))

    assert out["is_positive"].shape == (B, 2)
    assert out["star_rating"].shape == (B, 1)
    assert out["is_positive"].dtype == jnp.float32
    assert out["star_rating"].dtype == jnp.float32
    assert bool(jnp.all(jnp.isfinite(out["is_positive"])))
    assert bool(jnp.all(jnp.isfinite(out["star_rating"])))

    print("KERNEL_OK")
</pallas_src>

<mosaic_0001>
module attributes {stable_mosaic.version = 11 : i64} {
  func.func @_layernorm_kernel(%arg0: memref<16x32xf32, #tpu.memory_space<vmem>>, %arg1: memref<1x32xf32, #tpu.memory_space<vmem>>, %arg2: memref<1x32xf32, #tpu.memory_space<vmem>>, %arg3: memref<16x32xf32, #tpu.memory_space<vmem>>) attributes {dimension_semantics = [], scalar_prefetch = 0 : i64, scratch_operands = 0 : i64, tpu.core_type = #tpu.core_type<tc>} {
    %c0 = arith.constant 0 : index
    %c0_0 = arith.constant 0 : index
    %0 = vector.load %arg0[%c0, %c0_0] : memref<16x32xf32, #tpu.memory_space<vmem>>, vector<16x32xf32>
    %c0_1 = arith.constant 0 : index
    %c0_2 = arith.constant 0 : index
    %1 = vector.load %arg1[%c0_1, %c0_2] : memref<1x32xf32, #tpu.memory_space<vmem>>, vector<1x32xf32>
    %c0_3 = arith.constant 0 : index
    %c0_4 = arith.constant 0 : index
    %2 = vector.load %arg2[%c0_3, %c0_4] : memref<1x32xf32, #tpu.memory_space<vmem>>, vector<1x32xf32>
    %cst = arith.constant dense<0.000000e+00> : vector<16xf32>
    %3 = vector.multi_reduction <add>, %0, %cst [1] : vector<16x32xf32> to vector<16xf32>
    %4 = vector.shape_cast %3 : vector<16xf32> to vector<16x1xf32>
    %cst_5 = arith.constant 3.200000e+01 : f32
    %5 = vector.broadcast %cst_5 : f32 to vector<16x1xf32>
    %6 = arith.divf %4, %5 : vector<16x1xf32>
    %7 = vector.broadcast %6 : vector<16x1xf32> to vector<16x32xf32>
    %8 = arith.subf %0, %7 : vector<16x32xf32>
    %9 = arith.mulf %8, %8 : vector<16x32xf32>
    %cst_6 = arith.constant dense<0.000000e+00> : vector<16xf32>
    %10 = vector.multi_reduction <add>, %9, %cst_6 [1] : vector<16x32xf32> to vector<16xf32>
    %11 = vector.shape_cast %10 : vector<16xf32> to vector<16x1xf32>
    %cst_7 = arith.constant 3.200000e+01 : f32
    %12 = vector.broadcast %cst_7 : f32 to vector<16x1xf32>
    %13 = arith.divf %11, %12 : vector<16x1xf32>
    %14 = vector.broadcast %6 : vector<16x1xf32> to vector<16x32xf32>
    %15 = arith.subf %0, %14 : vector<16x32xf32>
    %cst_8 = arith.constant 9.99999996E-13 : f32
    %16 = vector.broadcast %cst_8 : f32 to vector<16x1xf32>
    %17 = arith.addf %13, %16 : vector<16x1xf32>
    %18 = math.rsqrt %17 : vector<16x1xf32>
    %19 = vector.broadcast %18 : vector<16x1xf32> to vector<16x32xf32>
    %20 = arith.mulf %15, %19 : vector<16x32xf32>
    %21 = vector.broadcast %1 : vector<1x32xf32> to vector<16x32xf32>
    %22 = arith.mulf %20, %21 : vector<16x32xf32>
    %23 = vector.broadcast %2 : vector<1x32xf32> to vector<16x32xf32>
    %24 = arith.addf %22, %23 : vector<16x32xf32>
    %c0_9 = arith.constant 0 : index
    %c0_10 = arith.constant 0 : index
    %25 = vector.load %arg3[%c0_9, %c0_10] : memref<16x32xf32, #tpu.memory_space<vmem>>, vector<16x32xf32>
    tpu.vector_store %arg3[%c0_9, %c0_10], %24 {strides = array<i32>} : memref<16x32xf32, #tpu.memory_space<vmem>>, vector<16x32xf32>,
    return
  }
}

module attributes {stable_mosaic.version = 11 : i64} {
  func.func @_bert_layer_kernel(%arg0: memref<16x32xf32, #tpu.memory_space<vmem>>, %arg1: memref<16x16xf32, #tpu.memory_space<vmem>>, %arg2: memref<32x96xf32, #tpu.memory_space<vmem>>, %arg3: memref<1x96xf32, #tpu.memory_space<vmem>>, %arg4: memref<32x32xf32, #tpu.memory_space<vmem>>, %arg5: memref<1x32xf32, #tpu.memory_space<vmem>>, %arg6: memref<1x32xf32, #tpu.memory_space<vmem>>, %arg7: memref<1x32xf32, #tpu.memory_space<vmem>>, %arg8: memref<32x64xf32, #tpu.memory_space<vmem>>, %arg9: memref<1x64xf32, #tpu.memory_space<vmem>>, %arg10: memref<64x32xf32, #tpu.memory_space<vmem>>, %arg11: memref<1x32xf32, #tpu.memory_space<vmem>>, %arg12: memref<1x32xf32, #tpu.memory_space<vmem>>, %arg13: memref<1x32xf32, #tpu.memory_space<vmem>>, %arg14: memref<16x32xf32, #tpu.memory_space<vmem>>) attributes {dimension_semantics = [], scalar_prefetch = 0 : i64, scratch_operands = 0 : i64, tpu.core_type = #tpu.core_type<tc>} {
    %c0 = arith.constant 0 : index
    %c0_0 = arith.constant 0 : index
    %0 = vector.load %arg0[%c0, %c0_0] : memref<16x32xf32, #tpu.memory_space<vmem>>, vector<16x32xf32>
    %c0_1 = arith.constant 0 : index
    %c0_2 = arith.constant 0 : index
    %1 = vector.load %arg1[%c0_1, %c0_2] : memref<16x16xf32, #tpu.memory_space<vmem>>, vector<16x16xf32>
    %c0_3 = arith.constant 0 : index
    %c0_4 = arith.constant 0 : index
    %2 = vector.load %arg2[%c0_3, %c0_4] : memref<32x96xf32, #tpu.memory_space<vmem>>, vector<32x96xf32>
    %cst = arith.constant dense<0.000000e+00> : vector<16x96xf32>
    %3 = tpu.matmul %0, %2, %cst {dimension_numbers = #tpu.dot_dimension_numbers<[1], [0], [0], [1], [0, 0, 1, 1], [], []>} : vector<16x32xf32>, vector<32x96xf32>, vector<16x96xf32> -> vector<16x96xf32>
    %c0_5 = arith.constant 0 : index
    %c0_6 = arith.constant 0 : index
    %4 = vector.load %arg3[%c0_5, %c0_6] : memref<1x96xf32, #tpu.memory_space<vmem>>, vector<1x96xf32>
    %5 = vector.broadcast %4 : vector<1x96xf32> to vector<16x96xf32>
    %6 = arith.addf %3, %5 : vector<16x96xf32>
    %c0_7 = arith.constant 0 : index
    %c0_8 = arith.constant 0 : index
    %7 = vector.load %arg4[%c0_7, %c0_8] : memref<32x32xf32, #tpu.memory_space<vmem>>, vector<32x32xf32>
    %cst_9 = arith.constant 0.000000e+00 : f32
    %8 = vector.broadcast %cst_9 : f32 to vector<16x32xf32>
    %9 = vector.extract_strided_slice %6 {offsets = [0, 0], sizes = [16, 8], strides = [1, 1]} : vector<16x96xf32> to vector<16x8xf32>
    %10 = vector.extract_strided_slice %6 {offsets = [0, 32], sizes = [16, 8], strides = [1, 1]} : vector<16x96xf32> to vector<16x8xf32>
    %11 = vector.extract_strided_slice %6 {offsets = [0, 64], sizes = [16, 8], strides = [1, 1]} : vector<16x96xf32> to vector<16x8xf32>
    %cst_10 = arith.constant dense<0.000000e+00> : vector<16x16xf32>
    %12 = tpu.matmul %9, %10, %cst_10 {dimension_numbers = #tpu.dot_dimension_numbers<[1], [1], [0], [0], [0, 0, 1, 0], [], []>} : vector<16x8xf32>, vector<16x8xf32>, vector<16x16xf32> -> vector<16x16xf32>
    %cst_11 = arith.constant 0.353553385 : f32
    %13 = vector.broadcast %cst_11 : f32 to vector<16x16xf32>
    %14 = arith.mulf %12, %13 : vector<16x16xf32>
    %15 = arith.addf %14, %1 : vector<16x16xf32>
    %cst_12 = arith.constant dense<0xFF800000> : vector<16xf32>
    %16 = vector.multi_reduction <maximumf>, %15, %cst_12 [1] : vector<16x16xf32> to vector<16xf32>
    %17 = vector.shape_cast %16 : vector<16xf32> to vector<16x1xf32>
    %18 = vector.broadcast %17 : vector<16x1xf32> to vector<16x16xf32>
    %19 = arith.subf %15, %18 : vector<16x16xf32>
    %20 = math.exp %19 : vector<16x16xf32>
    %cst_13 = arith.constant dense<0.000000e+00> : vector<16xf32>
    %21 = vector.multi_reduction <add>, %20, %cst_13 [1] : vector<16x16xf32> to vector<16xf32>
    %22 = vector.shape_cast %21 : vector<16xf32> to vector<16x1xf32>
    %23 = tpu.reciprocal %22 {approx = true} : vector<16x1xf32> -> vector<16x1xf32>
    %24 = vector.broadcast %23 : vector<16x1xf32> to vector<16x16xf32>
    %25 = arith.mulf %20, %24 : vector<16x16xf32>
    %cst_14 = arith.constant dense<0.000000e+00> : vector<16x8xf32>
    %26 = tpu.matmul %25, %11, %cst_14 {dimension_numbers = #tpu.dot_dimension_numbers<[1], [0], [0], [1], [0, 0, 1, 1], [], []>} : vector<16x16xf32>, vector<16x8xf32>, vector<16x8xf32> -> vector<16x8xf32>
    %27 = vector.extract_strided_slice %7 {offsets = [0, 0], sizes = [8, 32], strides = [1, 1]} : vector<32x32xf32> to vector<8x32xf32>
    %cst_15 = arith.constant dense<0.000000e+00> : vector<16x32xf32>
    %28 = tpu.matmul %26, %27, %cst_15 {dimension_numbers = #tpu.dot_dimension_numbers<[1], [0], [0], [1], [0, 0, 1, 1], [], []>} : vector<16x8xf32>, vector<8x32xf32>, vector<16x32xf32> -> vector<16x32xf32>
    %29 = arith.addf %8, %28 : vector<16x32xf32>
    %30 = vector.extract_strided_slice %6 {offsets = [0, 8], sizes = [16, 8], strides = [1, 1]} : vector<16x96xf32> to vector<16x8xf32>
    %31 = vector.extract_strided_slice %6 {offsets = [0, 40], sizes = [16, 8], strides = [1, 1]} : vector<16x96xf32> to vector<16x8xf32>
    %32 = vector.extract_strided_slice %6 {offsets = [0, 72], sizes = [16, 8], strides = [1, 1]} : vector<16x96xf32> to vector<16x8xf32>
    %cst_16 = arith.constant dense<0.000000e+00> : vector<16x16xf32>
    %33 = tpu.matmul %30, %31, %cst_16 {dimension_numbers = #tpu.dot_dimension_numbers<[1], [1], [0], [0], [0, 0, 1, 0], [], []>} : vector<16x8xf32>, vector<16x8xf32>, vector<16x16xf32> -> vector<16x16xf32>
    %cst_17 = arith.constant 0.353553385 : f32
    %34 = vector.broadcast %cst_17 : f32 to vector<16x16xf32>
    %35 = arith.mulf %33, %34 : vector<16x16xf32>
    %36 = arith.addf %35, %1 : vector<16x16xf32>
    %cst_18 = arith.constant dense<0xFF800000> : vector<16xf32>
    %37 = vector.multi_reduction <maximumf>, %36, %cst_18 [1] : vector<16x16xf32> to vector<16xf32>
    %38 = vector.shape_cast %37 : vector<16xf32> to vector<16x1xf32>
    %39 = vector.broadcast %38 : vector<16x1xf32> to vector<16x16xf32>
    %40 = arith.subf %36, %39 : vector<16x16xf32>
    %41 = math.exp %40 : vector<16x16xf32>
    %cst_19 = arith.constant dense<0.000000e+00> : vector<16xf32>
    %42 = vector.multi_reduction <add>, %41, %cst_19 [1] : vector<16x16xf32> to vector<16xf32>
    %43 = vector.shape_cast %42 : vector<16xf32> to vector<16x1xf32>
    %44 = tpu.reciprocal %43 {approx = true} : vector<16x1xf32> -> vector<16x1xf32>
    %45 = vector.broadcast %44 : vector<16x1xf32> to vector<16x16xf32>
    %46 = arith.mulf %41, %45 : vector<16x16xf32>
    %cst_20 = arith.constant dense<0.000000e+00> : vector<16x8xf32>
    %47 = tpu.matmul %46, %32, %cst_20 {dimension_numbers = #tpu.dot_dimension_numbers<[1], [0], [0], [1], [0, 0, 1, 1], [], []>} : vector<16x16xf32>, vector<16x8xf32>, vector<16x8xf32> -> vector<16x8xf32>
    %48 = vector.extract_strided_slice %7 {offsets = [8, 0], sizes = [8, 32], strides = [1, 1]} : vector<32x32xf32> to vector<8x32xf32>
    %cst_21 = arith.constant dense<0.000000e+00> : vector<16x32xf32>
    %49 = tpu.matmul %47, %48, %cst_21 {dimension_numbers = #tpu.dot_dimension_numbers<[1], [0], [0], [1], [0, 0, 1, 1], [], []>} : vector<16x8xf32>, vector<8x32xf32>, vector<16x32xf32> -> vector<16x32xf32>
    %50 = arith.addf %29, %49 : vector<16x32xf32>
    %51 = vector.extract_strided_slice %6 {offsets = [0, 16], sizes = [16, 8], strides = [1, 1]} : vector<16x96xf32> to vector<16x8xf32>
    %52 = vector.extract_strided_slice %6 {offsets = [0, 48], sizes = [16, 8], strides = [1, 1]} : vector<16x96xf32> to vector<16x8xf32>
    %53 = vector.extract_strided_slice %6 {offsets = [0, 80], sizes = [16, 8], strides = [1, 1]} : vector<16x96xf32> to vector<16x8xf32>
    %cst_22 = arith.constant dense<0.000000e+00> : vector<16x16xf32>
    %54 = tpu.matmul %51, %52, %cst_22 {dimension_numbers = #tpu.dot_dimension_numbers<[1], [1], [0], [0], [0, 0, 1, 0], [], []>} : vector<16x8xf32>, vector<16x8xf32>, vector<16x16xf32> -> vector<16x16xf32>
    %cst_23 = arith.constant 0.353553385 : f32
    %55 = vector.broadcast %cst_23 : f32 to vector<16x16xf32>
    %56 = arith.mulf %54, %55 : vector<16x16xf32>
    %57 = arith.addf %56, %1 : vector<16x16xf32>
    %cst_24 = arith.constant dense<0xFF800000> : vector<16xf32>
    %58 = vector.multi_reduction <maximumf>, %57, %cst_24 [1] : vector<16x16xf32> to vector<16xf32>
    %59 = vector.shape_cast %58 : vector<16xf32> to vector<16x1xf32>
    %60 = vector.broadcast %59 : vector<16x1xf32> to vector<16x16xf32>
    %61 = arith.subf %57, %60 : vector<16x16xf32>
    %62 = math.exp %61 : vector<16x16xf32>
    %cst_25 = arith.constant dense<0.000000e+00> : vector<16xf32>
    %63 = vector.multi_reduction <add>, %62, %cst_25 [1] : vector<16x16xf32> to vector<16xf32>
    %64 = vector.shape_cast %63 : vector<16xf32> to vector<16x1xf32>
    %65 = tpu.reciprocal %64 {approx = true} : vector<16x1xf32> -> vector<16x1xf32>
    %66 = vector.broadcast %65 : vector<16x1xf32> to vector<16x16xf32>
    %67 = arith.mulf %62, %66 : vector<16x16xf32>
    %cst_26 = arith.constant dense<0.000000e+00> : vector<16x8xf32>
    %68 = tpu.matmul %67, %53, %cst_26 {dimension_numbers = #tpu.dot_dimension_numbers<[1], [0], [0], [1], [0, 0, 1, 1], [], []>} : vector<16x16xf32>, vector<16x8xf32>, vector<16x8xf32> -> vector<16x8xf32>
    %69 = vector.extract_strided_slice %7 {offsets = [16, 0], sizes = [8, 32], strides = [1, 1]} : vector<32x32xf32> to vector<8x32xf32>
    %cst_27 = arith.constant dense<0.000000e+00> : vector<16x32xf32>
    %70 = tpu.matmul %68, %69, %cst_27 {dimension_numbers = #tpu.dot_dimension_numbers<[1], [0], [0], [1], [0, 0, 1, 1], [], []>} : vector<16x8xf32>, vector<8x32xf32>, vector<16x32xf32> -> vector<16x32xf32>
    %71 = arith.addf %50, %70 : vector<16x32xf32>
    %72 = vector.extract_strided_slice %6 {offsets = [0, 24], sizes = [16, 8], strides = [1, 1]} : vector<16x96xf32> to vector<16x8xf32>
    %73 = vector.extract_strided_slice %6 {offsets = [0, 56], sizes = [16, 8], strides = [1, 1]} : vector<16x96xf32> to vector<16x8xf32>
    %74 = vector.extract_strided_slice %6 {offsets = [0, 88], sizes = [16, 8], strides = [1, 1]} : vector<16x96xf32> to vector<16x8xf32>
    %cst_28 = arith.constant dense<0.000000e+00> : vector<16x16xf32>
    %75 = tpu.matmul %72, %73, %cst_28 {dimension_numbers = #tpu.dot_dimension_numbers<[1], [1], [0], [0], [0, 0, 1, 0], [], []>} : vector<16x8xf32>, vector<16x8xf32>, vector<16x16xf32> -> vector<16x16xf32>
    %cst_29 = arith.constant 0.353553385 : f32
    %76 = vector.broadcast %cst_29 : f32 to vector<16x16xf32>
    %77 = arith.mulf %75, %76 : vector<16x16xf32>
    %78 = arith.addf %77, %1 : vector<16x16xf32>
    %cst_30 = arith.constant dense<0xFF800000> : vector<16xf32>
    %79 = vector.multi_reduction <maximumf>, %78, %cst_30 [1] : vector<16x16xf32> to vector<16xf32>
    %80 = vector.shape_cast %79 : vector<16xf32> to vector<16x1xf32>
    %81 = vector.broadcast %80 : vector<16x1xf32> to vector<16x16xf32>
    %82 = arith.subf %78, %81 : vector<16x16xf32>
    %83 = math.exp %82 : vector<16x16xf32>
    %cst_31 = arith.constant dense<0.000000e+00> : vector<16xf32>
    %84 = vector.multi_reduction <add>, %83, %cst_31 [1] : vector<16x16xf32> to vector<16xf32>
    %85 = vector.shape_cast %84 : vector<16xf32> to vector<16x1xf32>
    %86 = tpu.reciprocal %85 {approx = true} : vector<16x1xf32> -> vector<16x1xf32>
    %87 = vector.broadcast %86 : vector<16x1xf32> to vector<16x16xf32>
    %88 = arith.mulf %83, %87 : vector<16x16xf32>
    %cst_32 = arith.constant dense<0.000000e+00> : vector<16x8xf32>
    %89 = tpu.matmul %88, %74, %cst_32 {dimension_numbers = #tpu.dot_dimension_numbers<[1], [0], [0], [1], [0, 0, 1, 1], [], []>} : vector<16x16xf32>, vector<16x8xf32>, vector<16x8xf32> -> vector<16x8xf32>
    %90 = vector.extract_strided_slice %7 {offsets = [24, 0], sizes = [8, 32], strides = [1, 1]} : vector<32x32xf32> to vector<8x32xf32>
    %cst_33 = arith.constant dense<0.000000e+00> : vector<16x32xf32>
    %91 = tpu.matmul %89, %90, %cst_33 {dimension_numbers = #tpu.dot_dimension_numbers<[1], [0], [0], [1], [0, 0, 1, 1], [], []>} : vector<16x8xf32>, vector<8x32xf32>, vector<16x32xf32> -> vector<16x32xf32>
    %92 = arith.addf %71, %91 : vector<16x32xf32>
    %c0_34 = arith.constant 0 : index
    %c0_35 = arith.constant 0 : index
    %93 = vector.load %arg5[%c0_34, %c0_35] : memref<1x32xf32, #tpu.memory_space<vmem>>, vector<1x32xf32>
    %94 = vector.broadcast %93 : vector<1x32xf32> to vector<16x32xf32>
    %95 = arith.addf %92, %94 : vector<16x32xf32>
    %96 = arith.addf %0, %95 : vector<16x32xf32>
    %c0_36 = arith.constant 0 : index
    %c0_37 = arith.constant 0 : index
    %97 = vector.load %arg6[%c0_36, %c0_37] : memref<1x32xf32, #tpu.memory_space<vmem>>, vector<1x32xf32>
    %c0_38 = arith.constant 0 : index
    %c0_39 = arith.constant 0 : index
    %98 = vector.load %arg7[%c0_38, %c0_39] : memref<1x32xf32, #tpu.memory_space<vmem>>, vector<1x32xf32>
    %cst_40 = arith.constant dense<0.000000e+00> : vector<16xf32>
    %99 = vector.multi_reduction <add>, %96, %cst_40 [1] : vector<16x32xf32> to vector<16xf32>
    %100 = vector.shape_cast %99 : vector<16xf32> to vector<16x1xf32>
    %cst_41 = arith.constant 3.200000e+01 : f32
    %101 = vector.broadcast %cst_41 : f32 to vector<16x1xf32>
    %102 = arith.divf %100, %101 : vector<16x1xf32>
    %103 = vector.broadcast %102 : vector<16x1xf32> to vector<16x32xf32>
    %104 = arith.subf %96, %103 : vector<16x32xf32>
    %105 = arith.mulf %104, %104 : vector<16x32xf32>
    %cst_42 = arith.constant dense<0.000000e+00> : vector<16xf32>
    %106 = vector.multi_reduction <add>, %105, %cst_42 [1] : vector<16x32xf32> to vector<16xf32>
    %107 = vector.shape_cast %106 : vector<16xf32> to vector<16x1xf32>
    %cst_43 = arith.constant 3.200000e+01 : f32
    %108 = vector.broadcast %cst_43 : f32 to vector<16x1xf32>
    %109 = arith.divf %107, %108 : vector<16x1xf32>
    %110 = vector.broadcast %102 : vector<16x1xf32> to vector<16x32xf32>
    %111 = arith.subf %96, %110 : vector<16x32xf32>
    %cst_44 = arith.constant 9.99999996E-13 : f32
    %112 = vector.broadcast %cst_44 : f32 to vector<16x1xf32>
    %113 = arith.addf %109, %112 : vector<16x1xf32>
    %114 = math.rsqrt %113 : vector<16x1xf32>
    %115 = vector.broadcast %114 : vector<16x1xf32> to vector<16x32xf32>
    %116 = arith.mulf %111, %115 : vector<16x32xf32>
    %117 = vector.broadcast %97 : vector<1x32xf32> to vector<16x32xf32>
    %118 = arith.mulf %116, %117 : vector<16x32xf32>
    %119 = vector.broadcast %98 : vector<1x32xf32> to vector<16x32xf32>
    %120 = arith.addf %118, %119 : vector<16x32xf32>
    %c0_45 = arith.constant 0 : index
    %c0_46 = arith.constant 0 : index
    %121 = vector.load %arg8[%c0_45, %c0_46] : memref<32x64xf32, #tpu.memory_space<vmem>>, vector<32x64xf32>
    %cst_47 = arith.constant dense<0.000000e+00> : vector<16x64xf32>
    %122 = tpu.matmul %120, %121, %cst_47 {dimension_numbers = #tpu.dot_dimension_numbers<[1], [0], [0], [1], [0, 0, 1, 1], [], []>} : vector<16x32xf32>, vector<32x64xf32>, vector<16x64xf32> -> vector<16x64xf32>
    %c0_48 = arith.constant 0 : index
    %c0_49 = arith.constant 0 : index
    %123 = vector.load %arg9[%c0_48, %c0_49] : memref<1x64xf32, #tpu.memory_space<vmem>>, vector<1x64xf32>
    %124 = vector.broadcast %123 : vector<1x64xf32> to vector<16x64xf32>
    %125 = arith.addf %122, %124 : vector<16x64xf32>
    %cst_50 = arith.constant 5.000000e-01 : f32
    %126 = vector.broadcast %cst_50 : f32 to vector<16x64xf32>
    %127 = arith.mulf %126, %125 : vector<16x64xf32>
    %cst_51 = arith.constant 0.707106769 : f32
    %128 = vector.broadcast %cst_51 : f32 to vector<16x64xf32>
    %129 = arith.mulf %125, %128 : vector<16x64xf32>
    %130 = math.erf %129 : vector<16x64xf32>
    %cst_52 = arith.constant 1.000000e+00 : f32
    %131 = vector.broadcast %cst_52 : f32 to vector<16x64xf32>
    %132 = arith.addf %131, %130 : vector<16x64xf32>
    %133 = arith.mulf %127, %132 : vector<16x64xf32>
    %c0_53 = arith.constant 0 : index
    %c0_54 = arith.constant 0 : index
    %134 = vector.load %arg10[%c0_53, %c0_54] : memref<64x32xf32, #tpu.memory_space<vmem>>, vector<64x32xf32>
    %cst_55 = arith.constant dense<0.000000e+00> : vector<16x32xf32>
    %135 = tpu.matmul %133, %134, %cst_55 {dimension_numbers = #tpu.dot_dimension_numbers<[1], [0], [0], [1], [0, 0, 1, 1], [], []>} : vector<16x64xf32>, vector<64x32xf32>, vector<16x32xf32> -> vector<16x32xf32>
    %c0_56 = arith.constant 0 : index
    %c0_57 = arith.constant 0 : index
    %136 = vector.load %arg11[%c0_56, %c0_57] : memref<1x32xf32, #tpu.memory_space<vmem>>, vector<1x32xf32>
    %137 = vector.broadcast %136 : vector<1x32xf32> to vector<16x32xf32>
    %138 = arith.addf %135, %137 : vector<16x32xf32>
    %139 = arith.addf %120, %138 : vector<16x32xf32>
    %c0_58 = arith.constant 0 : index
    %c0_59 = arith.constant 0 : index
    %140 = vector.load %arg12[%c0_58, %c0_59] : memref<1x32xf32, #tpu.memory_space<vmem>>, vector<1x32xf32>
    %c0_60 = arith.constant 0 : index
    %c0_61 = arith.constant 0 : index
    %141 = vector.load %arg13[%c0_60, %c0_61] : memref<1x32xf32, #tpu.memory_space<vmem>>, vector<1x32xf32>
    %cst_62 = arith.constant dense<0.000000e+00> : vector<16xf32>
    %142 = vector.multi_reduction <add>, %139, %cst_62 [1] : vector<16x32xf32> to vector<16xf32>
    %143 = vector.shape_cast %142 : vector<16xf32> to vector<16x1xf32>
    %cst_63 = arith.constant 3.200000e+01 : f32
    %144 = vector.broadcast %cst_63 : f32 to vector<16x1xf32>
    %145 = arith.divf %143, %144 : vector<16x1xf32>
    %146 = vector.broadcast %145 : vector<16x1xf32> to vector<16x32xf32>
    %147 = arith.subf %139, %146 : vector<16x32xf32>
    %148 = arith.mulf %147, %147 : vector<16x32xf32>
    %cst_64 = arith.constant dense<0.000000e+00> : vector<16xf32>
    %149 = vector.multi_reduction <add>, %148, %cst_64 [1] : vector<16x32xf32> to vector<16xf32>
    %150 = vector.shape_cast %149 : vector<16xf32> to vector<16x1xf32>
    %cst_65 = arith.constant 3.200000e+01 : f32
    %151 = vector.broadcast %cst_65 : f32 to vector<16x1xf32>
    %152 = arith.divf %150, %151 : vector<16x1xf32>
    %153 = vector.broadcast %145 : vector<16x1xf32> to vector<16x32xf32>
    %154 = arith.subf %139, %153 : vector<16x32xf32>
    %cst_66 = arith.constant 9.99999996E-13 : f32
    %155 = vector.broadcast %cst_66 : f32 to vector<16x1xf32>
    %156 = arith.addf %152, %155 : vector<16x1xf32>
    %157 = math.rsqrt %156 : vector<16x1xf32>
    %158 = vector.broadcast %157 : vector<16x1xf32> to vector<16x32xf32>
    %159 = arith.mulf %154, %158 : vector<16x32xf32>
    %160 = vector.broadcast %140 : vector<1x32xf32> to vector<16x32xf32>
    %161 = arith.mulf %159, %160 : vector<16x32xf32>
    %162 = vector.broadcast %141 : vector<1x32xf32> to vector<16x32xf32>
    %163 = arith.addf %161, %162 : vector<16x32xf32>
    %c0_67 = arith.constant 0 : index
    %c0_68 = arith.constant 0 : index
    %164 = vector.load %arg14[%c0_67, %c0_68] : memref<16x32xf32, #tpu.memory_space<vmem>>, vector<16x32xf32>
    tpu.vector_store %arg14[%c0_67, %c0_68], %163 {strides = array<i32>} : memref<16x32xf32, #tpu.memory_space<vmem>>, vector<16x32xf32>,
    return
  }
}

</mosaic_0001>

<llo_original>
// kernel: _lambda_.3
$region0: #{_lambda_.3}
  #allocation0 [shape = 'u32[]', space=smem, size = 0x4, offset = 0x4, fixed_abs, tag = 'smem constant byte address 0x4 - core index']
  #allocation1 [shape = 'u32[144,128]{1,0:T(1,128)}', space=vmem, size = 0x12000, scoped, tag = 'internal scratch']
  %s0 = inlined_call_operand.vmem [shape: f32[16,32], index: 0, kind: input, shape index: {}]
  %s1 = inlined_call_operand.vmem [shape: f32[1,32], index: 1, kind: input, shape index: {}]
  %s2 = inlined_call_operand.vmem [shape: f32[1,32], index: 2, kind: input, shape index: {}]
  %s3 = inlined_call_operand.vmem [shape: f32[16,32], index: 3, kind: output, shape index: {}]
  %s4 = sld [smem:[#allocation0]]
  $region22: #{_lambda_.3} parent=0
    _
  %s6 = ssub.s32 1, %s4
  %s7 = scalar_select 0, %s6, %s4
  // Predicated region
  $region2: #{_lambda_.3} parent=0 // pred_check
    _
  $region3: #{_lambda_.3} parent=0 // pred_check_branch
    %9 = sbr.rel (0) target = $region5
  $region4: #{_lambda_.3} parent=0 // pred_region
    _
  $region5: #{_lambda_.3} parent=0 // pred_fallthru
    _
  // Predicated region
  $region6: #{_lambda_.3} parent=0 // pred_check
    _
  $region7: #{_lambda_.3} parent=0 // pred_check_branch
    %11 = sbr.rel (0) target = $region9
  $region8: #{_lambda_.3} parent=0 // pred_region
    _
  $region9: #{_lambda_.3} parent=0 // pred_fallthru
    _
  // Predicated region
  $region10: #{_lambda_.3} parent=0 // pred_check
    _
  $region11: #{_lambda_.3} parent=0 // pred_check_branch
    %13 = sbr.rel (0) target = $region13
  $region12: #{_lambda_.3} parent=0 // pred_region
    _
  $region13: #{_lambda_.3} parent=0 // pred_fallthru
    _
  %v14 = vld [vmem:[%s0] sm:$0xff]
  %v15 = vld [vmem:[%s0 + $0x8] sm:$0xff]
  %v16 = vld [vmem:[%s1] sm:$0x1]
  %v17 = vld [vmem:[%s2] sm:$0x1]
  %vm18 = vcmask 261120
  %v19 = vsel %vm18, %v14, 0.0
  %20 = vadd.xlane.f32.xlu0 %v19
  %v21 = vpop.xlane.xlu0 %20
  %v22 = vsel %vm18, %v15, 0.0
  %23 = vadd.xlane.f32.xlu0 %v22
  %v24 = vpop.xlane.xlu0 %23
  %v25 = vrcp.pop 32.0
  %v26 = vmul.f32 %v21, %v25
  %v27 = vmul.f32 %v24, %v25
  %v28 = vsub.f32 %v14, %v26
  %v29 = vsub.f32 %v15, %v27
  %v30 = vmul.f32 %v28, %v28
  %v31 = vmul.f32 %v29, %v29
  %v32 = vsel %vm18, %v30, 0.0
  %33 = vadd.xlane.f32.xlu0 %v32
  %v34 = vpop.xlane.xlu0 %33
  %v35 = vsel %vm18, %v31, 0.0
  %36 = vadd.xlane.f32.xlu0 %v35
  %v37 = vpop.xlane.xlu0 %36
  %v38 = vmul.f32 %v34, %v25
  %v39 = vmul.f32 %v37, %v25
  %v40 = vadd.f32 %v38, 1e-12
  %v41 = vadd.f32 %v39, 1e-12
  %v42 = vrsqrt.pop %v40
  %v43 = vrsqrt.pop %v41
  %v44 = vmul.f32 %v28, %v42
  %v45 = vmul.f32 %v29, %v43
  %v47 = vlaneseq
  %v48 = vshrl.u32 %v47, 7
  %v49 = vsub.s32 0, %v48
  %v50 = vrot.slane %v16, %v49
  %v52 = vmul.f32 %v44, %v50
  %v53 = vmul.f32 %v45, %v50
  %v55 = vlaneseq
  %v56 = vshrl.u32 %v55, 7
  %v57 = vsub.s32 0, %v56
  %v58 = vrot.slane %v17, %v57
  %v60 = vadd.f32 %v52, %v58
  %v61 = vadd.f32 %v53, %v58
  %62 = vst.msk [vmem:[%s3] sm:$0xff] %vm18, %v60
  %63 = vst.msk [vmem:[%s3 + $0x8] sm:$0xff] %vm18, %v61
  // Predicated region
  $region14: #{_lambda_.3} parent=0 // pred_check
    _
  $region15: #{_lambda_.3} parent=0 // pred_check_branch
    %65 = sbr.rel (0) target = $region17
  $region16: #{_lambda_.3} parent=0 // pred_region
    _
  $region17: #{_lambda_.3} parent=0 // pred_fallthru
    _
  // Predicated region
  $region18: #{_lambda_.3} parent=0 // pred_check
    _
  $region19: #{_lambda_.3} parent=0 // pred_check_branch
    %67 = sbr.rel (0) target = $region21
  $region20: #{_lambda_.3} parent=0 // pred_region
    _
  $region21: #{_lambda_.3} parent=0 // pred_fallthru
    _

// kernel: _lambda_.4
$region0: #{_lambda_.4}
  #allocation0 [shape = 'u32[]', space=smem, size = 0x4, offset = 0x4, fixed_abs, tag = 'smem constant byte address 0x4 - core index']
  #allocation1 [shape = 'u32[144,128]{1,0:T(1,128)}', space=vmem, size = 0x12000, scoped, tag = 'internal scratch']
  %s0 = inlined_call_operand.vmem [shape: f32[16,32], index: 0, kind: input, shape index: {}]
  %s1 = inlined_call_operand.vmem [shape: f32[16,16], index: 1, kind: input, shape index: {}]
  %s2 = inlined_call_operand.vmem [shape: f32[32,96], index: 2, kind: input, shape index: {}]
  %s3 = inlined_call_operand.vmem [shape: f32[1,96], index: 3, kind: input, shape index: {}]
  %s4 = inlined_call_operand.vmem [shape: f32[32,32], index: 4, kind: input, shape index: {}]
  %s5 = inlined_call_operand.vmem [shape: f32[1,32], index: 5, kind: input, shape index: {}]
  %s6 = inlined_call_operand.vmem [shape: f32[1,32], index: 6, kind: input, shape index: {}]
  %s7 = inlined_call_operand.vmem [shape: f32[1,32], index: 7, kind: input, shape index: {}]
  %s8 = inlined_call_operand.vmem [shape: f32[32,64], index: 8, kind: input, shape index: {}]
  %s9 = inlined_call_operand.vmem [shape: f32[1,64], index: 9, kind: input, shape index: {}]
  %s10 = inlined_call_operand.vmem [shape: f32[64,32], index: 10, kind: input, shape index: {}]
  %s11 = inlined_call_operand.vmem [shape: f32[1,32], index: 11, kind: input, shape index: {}]
  %s12 = inlined_call_operand.vmem [shape: f32[1,32], index: 12, kind: input, shape index: {}]
  %s13 = inlined_call_operand.vmem [shape: f32[1,32], index: 13, kind: input, shape index: {}]
  %s14 = inlined_call_operand.vmem [shape: f32[16,32], index: 14, kind: output, shape index: {}]
  %s15 = sld [smem:[#allocation0]]
  $region66: #{_lambda_.4} parent=0
    _
  %s17 = ssub.s32 1, %s15
  %s18 = scalar_select 0, %s17, %s15
  // Predicated region
  $region2: #{_lambda_.4} parent=0 // pred_check
    _
  $region3: #{_lambda_.4} parent=0 // pred_check_branch
    %20 = sbr.rel (0) target = $region5
  $region4: #{_lambda_.4} parent=0 // pred_region
    _
  $region5: #{_lambda_.4} parent=0 // pred_fallthru
    _
  // Predicated region
  $region6: #{_lambda_.4} parent=0 // pred_check
    _
  $region7: #{_lambda_.4} parent=0 // pred_check_branch
    %22 = sbr.rel (0) target = $region9
  $region8: #{_lambda_.4} parent=0 // pred_region
    _
  $region9: #{_lambda_.4} parent=0 // pred_fallthru
    _
  // Predicated region
  $region10: #{_lambda_.4} parent=0 // pred_check
    _
  $region11: #{_lambda_.4} parent=0 // pred_check_branch
    %24 = sbr.rel (0) target = $region13
  $region12: #{_lambda_.4} parent=0 // pred_region
    _
  $region13: #{_lambda_.4} parent=0 // pred_fallthru
    _
  // Predicated region
  $region14: #{_lambda_.4} parent=0 // pred_check
    _
  $region15: #{_lambda_.4} parent=0 // pred_check_branch
    %26 = sbr.rel (0) target = $region17
  $region16: #{_lambda_.4} parent=0 // pred_region
    _
  $region17: #{_lambda_.4} parent=0 // pred_fallthru
    _
  // Predicated region
  $region18: #{_lambda_.4} parent=0 // pred_check
    _
  $region19: #{_lambda_.4} parent=0 // pred_check_branch
    %28 = sbr.rel (0) target = $region21
  $region20: #{_lambda_.4} parent=0 // pred_region
    _
  $region21: #{_lambda_.4} parent=0 // pred_fallthru
    _
  // Predicated region
  $region22: #{_lambda_.4} parent=0 // pred_check
    _
  $region23: #{_lambda_.4} parent=0 // pred_check_branch
    %30 = sbr.rel (0) target = $region25
  $region24: #{_lambda_.4} parent=0 // pred_region
    _
  $region25: #{_lambda_.4} parent=0 // pred_fallthru
    _
  // Predicated region
  $region26: #{_lambda_.4} parent=0 // pred_check
    _
  $region27: #{_lambda_.4} parent=0 // pred_check_branch
    %32 = sbr.rel (0) target = $region29
  $region28: #{_lambda_.4} parent=0 // pred_region
    _
  $region29: #{_lambda_.4} parent=0 // pred_fallthru
    _
  // Predicated region
  $region30: #{_lambda_.4} parent=0 // pred_check
    _
  $region31: #{_lambda_.4} parent=0 // pred_check_branch
    %34 = sbr.rel (0) target = $region33
  $region32: #{_lambda_.4} parent=0 // pred_region
    _
  $region33: #{_lambda_.4} parent=0 // pred_fallthru
    _
  // Predicated region
  $region34: #{_lambda_.4} parent=0 // pred_check
    _
  $region35: #{_lambda_.4} parent=0 // pred_check_branch
    %36 = sbr.rel (0) target = $region37
  $region36: #{_lambda_.4} parent=0 // pred_region
    _
  $region37: #{_lambda_.4} parent=0 // pred_fallthru
    _
  // Predicated region
  $region38: #{_lambda_.4} parent=0 // pred_check
    _
  $region39: #{_lambda_.4} parent=0 // pred_check_branch
    %38 = sbr.rel (0) target = $region41
  $region40: #{_lambda_.4} parent=0 // pred_region
    _
  $region41: #{_lambda_.4} parent=0 // pred_fallthru
    _
  // Predicated region
  $region42: #{_lambda_.4} parent=0 // pred_check
    _
  $region43: #{_lambda_.4} parent=0 // pred_check_branch
    %40 = sbr.rel (0) target = $region45
  $region44: #{_lambda_.4} parent=0 // pred_region
    _
  $region45: #{_lambda_.4} parent=0 // pred_fallthru
    _
  // Predicated region
  $region46: #{_lambda_.4} parent=0 // pred_check
    _
  $region47: #{_lambda_.4} parent=0 // pred_check_branch
    %42 = sbr.rel (0) target = $region49
  $region48: #{_lambda_.4} parent=0 // pred_region
    _
  $region49: #{_lambda_.4} parent=0 // pred_fallthru
    _
  // Predicated region
  $region50: #{_lambda_.4} parent=0 // pred_check
    _
  $region51: #{_lambda_.4} parent=0 // pred_check_branch
    %44 = sbr.rel (0) target = $region53
  $region52: #{_lambda_.4} parent=0 // pred_region
    _
  $region53: #{_lambda_.4} parent=0 // pred_fallthru
    _
  // Predicated region
  $region54: #{_lambda_.4} parent=0 // pred_check
    _
  $region55: #{_lambda_.4} parent=0 // pred_check_branch
    %46 = sbr.rel (0) target = $region57
  $region56: #{_lambda_.4} parent=0 // pred_region
    _
  $region57: #{_lambda_.4} parent=0 // pred_fallthru
    _
  %v47 = vld [vmem:[%s0] sm:$0xff]
  %v48 = vld [vmem:[%s0 + $0x8] sm:$0xff]
  %v49 = vld [vmem:[%s1] sm:$0xff]
  %v50 = vld [vmem:[%s1 + $0x8] sm:$0xff]
  %v51 = vld [vmem:[%s2] sm:$0xff]
  %v52 = vld [vmem:[%s2 + $0x8] sm:$0xff]
  %v53 = vld [vmem:[%s2 + $0x10] sm:$0xff]
  %v54 = vld [vmem:[%s2 + $0x18] sm:$0xff]
  %v55 = vld [vmem:[%s3] sm:$0x1]
  %v57 = vlaneseq
  %v58 = vshrl.u32 %v57, 7
  %v59 = vsub.s32 0, %v58
  %v60 = vrot.slane %v55, %v59
  %vm62 = vcmask 261120
  %v64 = vsel %vm62, %v47, 0
  %v67 = vsel %vm62, %v48, 0
  %69 = vmatprep.subr.mxu0 0.0
  %70 = vmatpush1.msra.mxu0 %v51
  %71 = vmatprep.subr.mxu0 0.0
  %72 = vmatpush1.msra.mxu0 %v52
  %73 = vmatprep.subr.mxu0 0.0
  %74 = vmatpush1.msra.mxu0 %v53
  %75 = vmatprep.subr.mxu0 0.0
  %76 = vmatpush1.msra.mxu0 %v54
  %77 = vmatprep.subr.mxu0 0.0
  %78 = vmatpush1.msra.mxu0 0.0
  %79 = vmatprep.subr.mxu0 0.0
  %80 = vmatpush1.msra.mxu0 0.0
  %81 = vmatprep.subr.mxu0 0.0
  %82 = vmatpush1.msra.mxu0 0.0
  %83 = vmatprep.subr.mxu0 0.0
  %84 = vmatpush1.msra.mxu0 0.0
  %85 = vmatprep.subr.mxu0 0.0
  %86 = vmatpush1.msra.mxu0 0.0
  %87 = vmatprep.subr.mxu0 0.0
  %88 = vmatpush1.msra.mxu0 0.0
  %89 = vmatprep.subr.mxu0 0.0
  %90 = vmatpush1.msra.mxu0 0.0
  %91 = vmatprep.subr.mxu0 0.0
  %92 = vmatpush1.msra.mxu0 0.0
  %93 = vmatprep.subr.mxu0 0.0
  %94 = vmatpush1.msra.mxu0 0.0
  %95 = vmatprep.subr.mxu0 0.0
  %96 = vmatpush1.msra.mxu0 0.0
  %97 = vmatprep.subr.mxu0 0.0
  %98 = vmatpush1.msra.mxu0 0.0
  %99 = vmatprep.subr.mxu0 0.0
  %100 = vmatpush1.msra.mxu0 0.0
  %101 = vmatprep.subr.mxu0 0.0
  %102 = vmatpush1.msra.mxu0 0.0
  %103 = vmatprep.subr.mxu0 0.0
  %104 = vmatpush1.msra.mxu0 0.0
  %105 = vmatprep.subr.mxu0 0.0
  %106 = vmatpush1.msra.mxu0 0.0
  %107 = vmatprep.subr.mxu0 0.0
  %108 = vmatpush1.msra.mxu0 0.0
  %109 = vmatprep.subr.mxu0 0.0
  %110 = vmatpush1.msra.mxu0 0.0
  %111 = vmatprep.subr.mxu0 0.0
  %112 = vmatpush1.msra.mxu0 0.0
  %113 = vmatprep.subr.mxu0 0.0
  %114 = vmatpush1.msra.mxu0 0.0
  %115 = vmatprep.subr.mxu0 0.0
  %116 = vmatpush1.msra.mxu0 0.0
  %117 = vmatprep.subr.mxu0 0.0
  %118 = vmatpush1.msra.mxu0 0.0
  %119 = vmatprep.subr.mxu0 0.0
  %120 = vmatpush1.msra.mxu0 0.0
  %121 = vmatprep.subr.mxu0 0.0
  %122 = vmatpush1.msra.mxu0 0.0
  %123 = vmatprep.subr.mxu0 0.0
  %124 = vmatpush1.msra.mxu0 0.0
  %125 = vmatprep.subr.mxu0 0.0
  %126 = vmatpush1.msra.mxu0 0.0
  %127 = vmatprep.subr.mxu0 0.0
  %128 = vmatpush1.msra.mxu0 0.0
  %129 = vmatprep.subr.mxu0 0.0
  %130 = vmatpush1.msra.mxu0 0.0
  %131 = vmatprep.subr.mxu0 0.0
  %132 = vmatpush1.msra.mxu0 0.0
  %133 = vmatprep.mubr.f32.mxu0 0.0
  %134 = vmatmul.mubr.f32.gmra.mrb[0].mxu0 %v64
  %v135 = vpop.f32.mrb[0].mxu0
  %v136 = vadd.f32 %v60, %v135
  %v137 = vpop.f32.mrb[0].mxu0
  %138 = vmatprep.mubr.f32.mxu0 0.0
  %139 = vmatmul.mubr.f32.gmra.mrb[0].mxu0 %v67
  %v140 = vpop.f32.mrb[0].mxu0
  %v141 = vadd.f32 %v60, %v140
  %v142 = vpop.f32.mrb[0].mxu0
  %143 = vdwg.mxu0
  %v144 = vld [vmem:[%s4] sm:$0xff]
  %v145 = vld [vmem:[%s4 + $0x8] sm:$0xff]
  %v146 = vld [vmem:[%s4 + $0x10] sm:$0xff]
  %v147 = vld [vmem:[%s4 + $0x18] sm:$0xff]
  %150 = vrot.lane.b32.xlu0 %v136, 96
  %v151 = vpop.permute.xlu0 %150
  %152 = vrot.lane.b32.xlu0 %v141, 96
  %v153 = vpop.permute.xlu0 %152
  %vm154 = vcmask 64512
  %v155 = vsel %vm154, %v136, 0
  %v157 = vsel %vm154, %v141, 0
  %v159 = vsel %vm154, %v151, 0
  %v161 = vsel %vm154, %v153, 0
  %163 = vmatprep.subr.mxu0 0.0
  %164 = vmatpush1.xpose.msra.mxu0 %v159
  %165 = vmatprep.subr.mxu0 0.0
  %166 = vmatpush1.xpose.msra.mxu0 %v161
  %167 = vmatprep.subr.mxu0 0.0
  %168 = vmatpush1.xpose.msra.mxu0 0.0
  %169 = vmatprep.subr.mxu0 0.0
  %170 = vmatpush1.xpose.msra.mxu0 0.0
  %171 = vmatprep.subr.mxu0 0.0
  %172 = vmatpush1.xpose.msra.mxu0 0.0
  %173 = vmatprep.subr.mxu0 0.0
  %174 = vmatpush1.xpose.msra.mxu0 0.0
  %175 = vmatprep.subr.mxu0 0.0
  %176 = vmatpush1.xpose.msra.mxu0 0.0
  %177 = vmatprep.subr.mxu0 0.0
  %178 = vmatpush1.xpose.msra.mxu0 0.0
  %179 = vmatprep.subr.mxu0 0.0
  %180 = vmatpush1.xpose.msra.mxu0 0.0
  %181 = vmatprep.subr.mxu0 0.0
  %182 = vmatpush1.xpose.msra.mxu0 0.0
  %183 = vmatprep.subr.mxu0 0.0
  %184 = vmatpush1.xpose.msra.mxu0 0.0
  %185 = vmatprep.subr.mxu0 0.0
  %186 = vmatpush1.xpose.msra.mxu0 0.0
  %187 = vmatprep.subr.mxu0 0.0
  %188 = vmatpush1.xpose.msra.mxu0 0.0
  %189 = vmatprep.subr.mxu0 0.0
  %190 = vmatpush1.xpose.msra.mxu0 0.0
  %191 = vmatprep.subr.mxu0 0.0
  %192 = vmatpush1.xpose.msra.mxu0 0.0
  %193 = vmatprep.subr.mxu0 0.0
  %194 = vmatpush1.xpose.msra.mxu0 0.0
  %195 = vmatprep.subr.mxu0 0.0
  %196 = vmatpush1.xpose.msra.mxu0 0.0
  %197 = vmatprep.subr.mxu0 0.0
  %198 = vmatpush1.xpose.msra.mxu0 0.0
  %199 = vmatprep.subr.mxu0 0.0
  %200 = vmatpush1.xpose.msra.mxu0 0.0
  %201 = vmatprep.subr.mxu0 0.0
  %202 = vmatpush1.xpose.msra.mxu0 0.0
  %203 = vmatprep.subr.mxu0 0.0
  %204 = vmatpush1.xpose.msra.mxu0 0.0
  %205 = vmatprep.subr.mxu0 0.0
  %206 = vmatpush1.xpose.msra.mxu0 0.0
  %207 = vmatprep.subr.mxu0 0.0
  %208 = vmatpush1.xpose.msra.mxu0 0.0
  %209 = vmatprep.subr.mxu0 0.0
  %210 = vmatpush1.xpose.msra.mxu0 0.0
  %211 = vmatprep.subr.mxu0 0.0
  %212 = vmatpush1.xpose.msra.mxu0 0.0
  %213 = vmatprep.subr.mxu0 0.0
  %214 = vmatpush1.xpose.msra.mxu0 0.0
  %215 = vmatprep.subr.mxu0 0.0
  %216 = vmatpush1.xpose.msra.mxu0 0.0
  %217 = vmatprep.subr.mxu0 0.0
  %218 = vmatpush1.xpose.msra.mxu0 0.0
  %219 = vmatprep.subr.mxu0 0.0
  %220 = vmatpush1.xpose.msra.mxu0 0.0
  %221 = vmatprep.subr.mxu0 0.0
  %222 = vmatpush1.xpose.msra.mxu0 0.0
  %223 = vmatprep.subr.mxu0 0.0
  %224 = vmatpush1.xpose.msra.mxu0 0.0
  %225 = vmatprep.subr.mxu0 0.0
  %226 = vmatpush1.xpose.msra.mxu0 0.0
  %227 = vmatprep.mubr.f32.mxu0 0.0
  %228 = vmatmul.mubr.f32.gmra.mrb[0].mxu0 %v155
  %v229 = vpop.f32.mrb[0].mxu0
  %v230 = vadd.f32 0.0, %v229
  %v231 = vpop.f32.mrb[0].mxu0
  %232 = vmatprep.mubr.f32.mxu0 0.0
  %233 = vmatmul.mubr.f32.gmra.mrb[0].mxu0 %v157
  %v234 = vpop.f32.mrb[0].mxu0
  %v235 = vadd.f32 0.0, %v234
  %v236 = vpop.f32.mrb[0].mxu0
  %237 = vdwg.mxu0
  %v238 = vmul.f32 %v230, 0.35355338
  %v239 = vmul.f32 %v235, 0.35355338
  %v240 = vadd.f32 %v238, %v49
  %v241 = vadd.f32 %v239, %v50
  %vm242 = vcmask 130048
  %v243 = vsel %vm242, %v240, -inf
  %244 = vmax.xlane.f32.xlu0 %v243
  %v245 = vpop.xlane.xlu0 %244
  %v246 = vsel %vm242, %v241, -inf
  %247 = vmax.xlane.f32.xlu0 %v246
  %v248 = vpop.xlane.xlu0 %247
  %v249 = vsub.f32 %v240, %v245
  %v250 = vsub.f32 %v241, %v248
  %v251 = vmul.f32 %v249, 1.442695
  %v252 = vpow.pop %v251
  %v253 = vmul.f32 %v250, 1.442695
  %v254 = vpow.pop %v253
  %v255 = vsel %vm242, %v252, 0.0
  %256 = vadd.xlane.f32.xlu0 %v255
  %v257 = vpop.xlane.xlu0 %256
  %v258 = vsel %vm242, %v254, 0.0
  %259 = vadd.xlane.f32.xlu0 %v258
  %v260 = vpop.xlane.xlu0 %259
  %v261 = vrcp.pop %v257
  %v262 = vrcp.pop %v260
  %v263 = vmul.f32 %v252, %v261
  %v264 = vmul.f32 %v254, %v262
  %265 = vrot.lane.b32.xlu0 %v136, 64
  %v266 = vpop.permute.xlu0 %265
  %267 = vrot.lane.b32.xlu0 %v141, 64
  %v268 = vpop.permute.xlu0 %267
  %v272 = vsel %vm242, %v263, 0
  %v275 = vsel %vm242, %v264, 0
  %277 = vmatprep.subr.mxu0 0.0
  %278 = vmatpush1.msra.mxu0 %v266
  %279 = vmatprep.subr.mxu0 0.0
  %280 = vmatpush1.msra.mxu0 %v268
  %281 = vmatprep.subr.mxu0 0.0
  %282 = vmatpush1.msra.mxu0 0.0
  %283 = vmatprep.subr.mxu0 0.0
  %284 = vmatpush1.msra.mxu0 0.0
  %285 = vmatprep.subr.mxu0 0.0
  %286 = vmatpush1.msra.mxu0 0.0
  %287 = vmatprep.subr.mxu0 0.0
  %288 = vmatpush1.msra.mxu0 0.0
  %289 = vmatprep.subr.mxu0 0.0
  %290 = vmatpush1.msra.mxu0 0.0
  %291 = vmatprep.subr.mxu0 0.0
  %292 = vmatpush1.msra.mxu0 0.0
  %293 = vmatprep.subr.mxu0 0.0
  %294 = vmatpush1.msra.mxu0 0.0
  %295 = vmatprep.subr.mxu0 0.0
  %296 = vmatpush1.msra.mxu0 0.0
  %297 = vmatprep.subr.mxu0 0.0
  %298 = vmatpush1.msra.mxu0 0.0
  %299 = vmatprep.subr.mxu0 0.0
  %300 = vmatpush1.msra.mxu0 0.0
  %301 = vmatprep.subr.mxu0 0.0
  %302 = vmatpush1.msra.mxu0 0.0
  %303 = vmatprep.subr.mxu0 0.0
  %304 = vmatpush1.msra.mxu0 0.0
  %305 = vmatprep.subr.mxu0 0.0
  %306 = vmatpush1.msra.mxu0 0.0
  %307 = vmatprep.subr.mxu0 0.0
  %308 = vmatpush1.msra.mxu0 0.0
  %309 = vmatprep.subr.mxu0 0.0
  %310 = vmatpush1.msra.mxu0 0.0
  %311 = vmatprep.subr.mxu0 0.0
  %312 = vmatpush1.msra.mxu0 0.0
  %313 = vmatprep.subr.mxu0 0.0
  %314 = vmatpush1.msra.mxu0 0.0
  %315 = vmatprep.subr.mxu0 0.0
  %316 = vmatpush1.msra.mxu0 0.0
  %317 = vmatprep.subr.mxu0 0.0
  %318 = vmatpush1.msra.mxu0 0.0
  %319 = vmatprep.subr.mxu0 0.0
  %320 = vmatpush1.msra.mxu0 0.0
  %321 = vmatprep.subr.mxu0 0.0
  %322 = vmatpush1.msra.mxu0 0.0
  %323 = vmatprep.subr.mxu0 0.0
  %324 = vmatpush1.msra.mxu0 0.0
  %325 = vmatprep.subr.mxu0 0.0
  %326 = vmatpush1.msra.mxu0 0.0
  %327 = vmatprep.subr.mxu0 0.0
  %328 = vmatpush1.msra.mxu0 0.0
  %329 = vmatprep.subr.mxu0 0.0
  %330 = vmatpush1.msra.mxu0 0.0
  %331 = vmatprep.subr.mxu0 0.0
  %332 = vmatpush1.msra.mxu0 0.0
  %333 = vmatprep.subr.mxu0 0.0
  %334 = vmatpush1.msra.mxu0 0.0
  %335 = vmatprep.subr.mxu0 0.0
  %336 = vmatpush1.msra.mxu0 0.0
  %337 = vmatprep.subr.mxu0 0.0
  %338 = vmatpush1.msra.mxu0 0.0
  %339 = vmatprep.subr.mxu0 0.0
  %340 = vmatpush1.msra.mxu0 0.0
  %341 = vmatprep.mubr.f32.mxu0 0.0
  %342 = vmatmul.mubr.f32.gmra.mrb[0].mxu0 %v272
  %v343 = vpop.f32.mrb[0].mxu0
  %v344 = vadd.f32 0.0, %v343
  %v345 = vpop.f32.mrb[0].mxu0
  %346 = vmatprep.mubr.f32.mxu0 0.0
  %347 = vmatmul.mubr.f32.gmra.mrb[0].mxu0 %v275
  %v348 = vpop.f32.mrb[0].mxu0
  %v349 = vadd.f32 0.0, %v348
  %v350 = vpop.f32.mrb[0].mxu0
  %351 = vdwg.mxu0
  %352 = vrot.lane.b32.xlu0 %v136, 120
  %v353 = vpop.permute.xlu0 %352
  %354 = vrot.lane.b32.xlu0 %v141, 120
  %v355 = vpop.permute.xlu0 %354
  %356 = vrot.lane.b32.xlu0 %v136, 88
  %v357 = vpop.permute.xlu0 %356
  %358 = vrot.lane.b32.xlu0 %v141, 88
  %v359 = vpop.permute.xlu0 %358
  %v360 = vsel %vm154, %v353, 0
  %v362 = vsel %vm154, %v355, 0
  %v364 = vsel %vm154, %v357, 0
  %v366 = vsel %vm154, %v359, 0
  %368 = vmatprep.subr.mxu0 0.0
  %369 = vmatpush1.xpose.msra.mxu0 %v364
  %370 = vmatprep.subr.mxu0 0.0
  %371 = vmatpush1.xpose.msra.mxu0 %v366
  %372 = vmatprep.subr.mxu0 0.0
  %373 = vmatpush1.xpose.msra.mxu0 0.0
  %374 = vmatprep.subr.mxu0 0.0
  %375 = vmatpush1.xpose.msra.mxu0 0.0
  %376 = vmatprep.subr.mxu0 0.0
  %377 = vmatpush1.xpose.msra.mxu0 0.0
  %378 = vmatprep.subr.mxu0 0.0
  %379 = vmatpush1.xpose.msra.mxu0 0.0
  %380 = vmatprep.subr.mxu0 0.0
  %381 = vmatpush1.xpose.msra.mxu0 0.0
  %382 = vmatprep.subr.mxu0 0.0
  %383 = vmatpush1.xpose.msra.mxu0 0.0
  %384 = vmatprep.subr.mxu0 0.0
  %385 = vmatpush1.xpose.msra.mxu0 0.0
  %386 = vmatprep.subr.mxu0 0.0
  %387 = vmatpush1.xpose.msra.mxu0 0.0
  %388 = vmatprep.subr.mxu0 0.0
  %389 = vmatpush1.xpose.msra.mxu0 0.0
  %390 = vmatprep.subr.mxu0 0.0
  %391 = vmatpush1.xpose.msra.mxu0 0.0
  %392 = vmatprep.subr.mxu0 0.0
  %393 = vmatpush1.xpose.msra.mxu0 0.0
  %394 = vmatprep.subr.mxu0 0.0
  %395 = vmatpush1.xpose.msra.mxu0 0.0
  %396 = vmatprep.subr.mxu0 0.0
  %397 = vmatpush1.xpose.msra.mxu0 0.0
  %398 = vmatprep.subr.mxu0 0.0
  %399 = vmatpush1.xpose.msra.mxu0 0.0
  %400 = vmatprep.subr.mxu0 0.0
  %401 = vmatpush1.xpose.msra.mxu0 0.0
  %402 = vmatprep.subr.mxu0 0.0
  %403 = vmatpush1.xpose.msra.mxu0 0.0
  %404 = vmatprep.subr.mxu0 0.0
  %405 = vmatpush1.xpose.msra.mxu0 0.0
  %406 = vmatprep.subr.mxu0 0.0
  %407 = vmatpush1.xpose.msra.mxu0 0.0
  %408 = vmatprep.subr.mxu0 0.0
  %409 = vmatpush1.xpose.msra.mxu0 0.0
  %410 = vmatprep.subr.mxu0 0.0
  %411 = vmatpush1.xpose.msra.mxu0 0.0
  %412 = vmatprep.subr.mxu0 0.0
  %413 = vmatpush1.xpose.msra.mxu0 0.0
  %414 = vmatprep.subr.mxu0 0.0
  %415 = vmatpush1.xpose.msra.mxu0 0.0
  %416 = vmatprep.subr.mxu0 0.0
  %417 = vmatpush1.xpose.msra.mxu0 0.0
  %418 = vmatprep.subr.mxu0 0.0
  %419 = vmatpush1.xpose.msra.mxu0 0.0
  %420 = vmatprep.subr.mxu0 0.0
  %421 = vmatpush1.xpose.msra.mxu0 0.0
  %422 = vmatprep.subr.mxu0 0.0
  %423 = vmatpush1.xpose.msra.mxu0 0.0
  %424 = vmatprep.subr.mxu0 0.0
  %425 = vmatpush1.xpose.msra.mxu0 0.0
  %426 = vmatprep.subr.mxu0 0.0
  %427 = vmatpush1.xpose.msra.mxu0 0.0
  %428 = vmatprep.subr.mxu0 0.0
  %429 = vmatpush1.xpose.msra.mxu0 0.0
  %430 = vmatprep.subr.mxu0 0.0
  %431 = vmatpush1.xpose.msra.mxu0 0.0
  %432 = vmatprep.mubr.f32.mxu0 0.0
  %433 = vmatmul.mubr.f32.gmra.mrb[0].mxu0 %v360
  %v434 = vpop.f32.mrb[0].mxu0
  %v435 = vadd.f32 0.0, %v434
  %v436 = vpop.f32.mrb[0].mxu0
  %437 = vmatprep.mubr.f32.mxu0 0.0
  %438 = vmatmul.mubr.f32.gmra.mrb[0].mxu0 %v362
  %v439 = vpop.f32.mrb[0].mxu0
  %v440 = vadd.f32 0.0, %v439
  %v441 = vpop.f32.mrb[0].mxu0
  %442 = vdwg.mxu0
  %v443 = vmul.f32 %v435, 0.35355338
  %v444 = vmul.f32 %v440, 0.35355338
  %v445 = vadd.f32 %v443, %v49
  %v446 = vadd.f32 %v444, %v50
  %v447 = vsel %vm242, %v445, -inf
  %448 = vmax.xlane.f32.xlu0 %v447
  %v449 = vpop.xlane.xlu0 %448
  %v450 = vsel %vm242, %v446, -inf
  %451 = vmax.xlane.f32.xlu0 %v450
  %v452 = vpop.xlane.xlu0 %451
  %v453 = vsub.f32 %v445, %v449
  %v454 = vsub.f32 %v446, %v452
  %v455 = vmul.f32 %v453, 1.442695
  %v456 = vpow.pop %v455
  %v457 = vmul.f32 %v454, 1.442695
  %v458 = vpow.pop %v457
  %v459 = vsel %vm242, %v456, 0.0
  %460 = vadd.xlane.f32.xlu0 %v459
  %v461 = vpop.xlane.xlu0 %460
  %v462 = vsel %vm242, %v458, 0.0
  %463 = vadd.xlane.f32.xlu0 %v462
  %v464 = vpop.xlane.xlu0 %463
  %v465 = vrcp.pop %v461
  %v466 = vrcp.pop %v464
  %v467 = vmul.f32 %v456, %v465
  %v468 = vmul.f32 %v458, %v466
  %469 = vrot.lane.b32.xlu0 %v136, 56
  %v470 = vpop.permute.xlu0 %469
  %471 = vrot.lane.b32.xlu0 %v141, 56
  %v472 = vpop.permute.xlu0 %471
  %v476 = vsel %vm242, %v467, 0
  %v479 = vsel %vm242, %v468, 0
  %481 = vmatprep.subr.mxu0 0.0
  %482 = vmatpush1.msra.mxu0 %v470
  %483 = vmatprep.subr.mxu0 0.0
  %484 = vmatpush1.msra.mxu0 %v472
  %485 = vmatprep.subr.mxu0 0.0
  %486 = vmatpush1.msra.mxu0 0.0
  %487 = vmatprep.subr.mxu0 0.0
  %488 = vmatpush1.msra.mxu0 0.0
  %489 = vmatprep.subr.mxu0 0.0
  %490 = vmatpush1.msra.mxu0 0.0
  %491 = vmatprep.subr.mxu0 0.0
  %492 = vmatpush1.msra.mxu0 0.0
  %493 = vmatprep.subr.mxu0 0.0
  %494 = vmatpush1.msra.mxu0 0.0
  %495 = vmatprep.subr.mxu0 0.0
  %496 = vmatpush1.msra.mxu0 0.0
  %497 = vmatprep.subr.mxu0 0.0
  %498 = vmatpush1.msra.mxu0 0.0
  %499 = vmatprep.subr.mxu0 0.0
  %500 = vmatpush1.msra.mxu0 0.0
  %501 = vmatprep.subr.mxu0 0.0
  %502 = vmatpush1.msra.mxu0 0.0
  %503 = vmatprep.subr.mxu0 0.0
  %504 = vmatpush1.msra.mxu0 0.0
  %505 = vmatprep.subr.mxu0 0.0
  %506 = vmatpush1.msra.mxu0 0.0
  %507 = vmatprep.subr.mxu0 0.0
  %508 = vmatpush1.msra.mxu0 0.0
  %509 = vmatprep.subr.mxu0 0.0
  %510 = vmatpush1.msra.mxu0 0.0
  %511 = vmatprep.subr.mxu0 0.0
  %512 = vmatpush1.msra.mxu0 0.0
  %513 = vmatprep.subr.mxu0 0.0
  %514 = vmatpush1.msra.mxu0 0.0
  %515 = vmatprep.subr.mxu0 0.0
  %516 = vmatpush1.msra.mxu0 0.0
  %517 = vmatprep.subr.mxu0 0.0
  %518 = vmatpush1.msra.mxu0 0.0
  %519 = vmatprep.subr.mxu0 0.0
  %520 = vmatpush1.msra.mxu0 0.0
  %521 = vmatprep.subr.mxu0 0.0
  %522 = vmatpush1.msra.mxu0 0.0
  %523 = vmatprep.subr.mxu0 0.0
  %524 = vmatpush1.msra.mxu0 0.0
  %525 = vmatprep.subr.mxu0 0.0
  %526 = vmatpush1.msra.mxu0 0.0
  %527 = vmatprep.subr.mxu0 0.0
  %528 = vmatpush1.msra.mxu0 0.0
  %529 = vmatprep.subr.mxu0 0.0
  %530 = vmatpush1.msra.mxu0 0.0
  %531 = vmatprep.subr.mxu0 0.0
  %532 = vmatpush1.msra.mxu0 0.0
  %533 = vmatprep.subr.mxu0 0.0
  %534 = vmatpush1.msra.mxu0 0.0
  %535 = vmatprep.subr.mxu0 0.0
  %536 = vmatpush1.msra.mxu0 0.0
  %537 = vmatprep.subr.mxu0 0.0
  %538 = vmatpush1.msra.mxu0 0.0
  %539 = vmatprep.subr.mxu0 0.0
  %540 = vmatpush1.msra.mxu0 0.0
  %541 = vmatprep.subr.mxu0 0.0
  %542 = vmatpush1.msra.mxu0 0.0
  %543 = vmatprep.subr.mxu0 0.0
  %544 = vmatpush1.msra.mxu0 0.0
  %545 = vmatprep.mubr.f32.mxu0 0.0
  %546 = vmatmul.mubr.f32.gmra.mrb[0].mxu0 %v476
  %v547 = vpop.f32.mrb[0].mxu0
  %v548 = vadd.f32 0.0, %v547
  %v549 = vpop.f32.mrb[0].mxu0
  %550 = vmatprep.mubr.f32.mxu0 0.0
  %551 = vmatmul.mubr.f32.gmra.mrb[0].mxu0 %v479
  %v552 = vpop.f32.mrb[0].mxu0
  %v553 = vadd.f32 0.0, %v552
  %v554 = vpop.f32.mrb[0].mxu0
  %555 = vdwg.mxu0
  %v557 = vsel %vm154, %v548, 0
  %v560 = vsel %vm154, %v553, 0
  %562 = vmatprep.subr.mxu0 0.0
  %563 = vmatpush1.msra.mxu0 %v145
  %564 = vmatprep.subr.mxu0 0.0
  %565 = vmatpush1.msra.mxu0 0.0
  %566 = vmatprep.subr.mxu0 0.0
  %567 = vmatpush1.msra.mxu0 0.0
  %568 = vmatprep.subr.mxu0 0.0
  %569 = vmatpush1.msra.mxu0 0.0
  %570 = vmatprep.subr.mxu0 0.0
  %571 = vmatpush1.msra.mxu0 0.0
  %572 = vmatprep.subr.mxu0 0.0
  %573 = vmatpush1.msra.mxu0 0.0
  %574 = vmatprep.subr.mxu0 0.0
  %575 = vmatpush1.msra.mxu0 0.0
  %576 = vmatprep.subr.mxu0 0.0
  %577 = vmatpush1.msra.mxu0 0.0
  %578 = vmatprep.subr.mxu0 0.0
  %579 = vmatpush1.msra.mxu0 0.0
  %580 = vmatprep.subr.mxu0 0.0
  %581 = vmatpush1.msra.mxu0 0.0
  %582 = vmatprep.subr.mxu0 0.0
  %583 = vmatpush1.msra.mxu0 0.0
  %584 = vmatprep.subr.mxu0 0.0
  %585 = vmatpush1.msra.mxu0 0.0
  %586 = vmatprep.subr.mxu0 0.0
  %587 = vmatpush1.msra.mxu0 0.0
  %588 = vmatprep.subr.mxu0 0.0
  %589 = vmatpush1.msra.mxu0 0.0
  %590 = vmatprep.subr.mxu0 0.0
  %591 = vmatpush1.msra.mxu0 0.0
  %592 = vmatprep.subr.mxu0 0.0
  %593 = vmatpush1.msra.mxu0 0.0
  %594 = vmatprep.subr.mxu0 0.0
  %595 = vmatpush1.msra.mxu0 0.0
  %596 = vmatprep.subr.mxu0 0.0
  %597 = vmatpush1.msra.mxu0 0.0
  %598 = vmatprep.subr.mxu0 0.0
  %599 = vmatpush1.msra.mxu0 0.0
  %600 = vmatprep.subr.mxu0 0.0
  %601 = vmatpush1.msra.mxu0 0.0
  %602 = vmatprep.subr.mxu0 0.0
  %603 = vmatpush1.msra.mxu0 0.0
  %604 = vmatprep.subr.mxu0 0.0
  %605 = vmatpush1.msra.mxu0 0.0
  %606 = vmatprep.subr.mxu0 0.0
  %607 = vmatpush1.msra.mxu0 0.0
  %608 = vmatprep.subr.mxu0 0.0
  %609 = vmatpush1.msra.mxu0 0.0
  %610 = vmatprep.subr.mxu0 0.0
  %611 = vmatpush1.msra.mxu0 0.0
  %612 = vmatprep.subr.mxu0 0.0
  %613 = vmatpush1.msra.mxu0 0.0
  %614 = vmatprep.subr.mxu0 0.0
  %615 = vmatpush1.msra.mxu0 0.0
  %616 = vmatprep.subr.mxu0 0.0
  %617 = vmatpush1.msra.mxu0 0.0
  %618 = vmatprep.subr.mxu0 0.0
  %619 = vmatpush1.msra.mxu0 0.0
  %620 = vmatprep.subr.mxu0 0.0
  %621 = vmatpush1.msra.mxu0 0.0
  %622 = vmatprep.subr.mxu0 0.0
  %623 = vmatpush1.msra.mxu0 0.0
  %624 = vmatprep.subr.mxu0 0.0
  %625 = vmatpush1.msra.mxu0 0.0
  %626 = vmatprep.mubr.f32.mxu0 0.0
  %627 = vmatmul.mubr.f32.gmra.mrb[0].mxu0 %v557
  %v628 = vpop.f32.mrb[0].mxu0
  %v629 = vadd.f32 0.0, %v628
  %v630 = vpop.f32.mrb[0].mxu0
  %631 = vmatprep.mubr.f32.mxu0 0.0
  %632 = vmatmul.mubr.f32.gmra.mrb[0].mxu0 %v560
  %v633 = vpop.f32.mrb[0].mxu0
  %v634 = vadd.f32 0.0, %v633
  %v635 = vpop.f32.mrb[0].mxu0
  %636 = vdwg.mxu0
  %v638 = vsel %vm154, %v344, 0
  %v641 = vsel %vm154, %v349, 0
  %643 = vmatprep.subr.mxu0 0.0
  %644 = vmatpush1.msra.mxu0 %v144
  %645 = vmatprep.subr.mxu0 0.0
  %646 = vmatpush1.msra.mxu0 0.0
  %647 = vmatprep.subr.mxu0 0.0
  %648 = vmatpush1.msra.mxu0 0.0
  %649 = vmatprep.subr.mxu0 0.0
  %650 = vmatpush1.msra.mxu0 0.0
  %651 = vmatprep.subr.mxu0 0.0
  %652 = vmatpush1.msra.mxu0 0.0
  %653 = vmatprep.subr.mxu0 0.0
  %654 = vmatpush1.msra.mxu0 0.0
  %655 = vmatprep.subr.mxu0 0.0
  %656 = vmatpush1.msra.mxu0 0.0
  %657 = vmatprep.subr.mxu0 0.0
  %658 = vmatpush1.msra.mxu0 0.0
  %659 = vmatprep.subr.mxu0 0.0
  %660 = vmatpush1.msra.mxu0 0.0
  %661 = vmatprep.subr.mxu0 0.0
  %662 = vmatpush1.msra.mxu0 0.0
  %663 = vmatprep.subr.mxu0 0.0
  %664 = vmatpush1.msra.mxu0 0.0
  %665 = vmatprep.subr.mxu0 0.0
  %666 = vmatpush1.msra.mxu0 0.0
  %667 = vmatprep.subr.mxu0 0.0
  %668 = vmatpush1.msra.mxu0 0.0
  %669 = vmatprep.subr.mxu0 0.0
  %670 = vmatpush1.msra.mxu0 0.0
  %671 = vmatprep.subr.mxu0 0.0
  %672 = vmatpush1.msra.mxu0 0.0
  %673 = vmatprep.subr.mxu0 0.0
  %674 = vmatpush1.msra.mxu0 0.0
  %675 = vmatprep.subr.mxu0 0.0
  %676 = vmatpush1.msra.mxu0 0.0
  %677 = vmatprep.subr.mxu0 0.0
  %678 = vmatpush1.msra.mxu0 0.0
  %679 = vmatprep.subr.mxu0 0.0
  %680 = vmatpush1.msra.mxu0 0.0
  %681 = vmatprep.subr.mxu0 0.0
  %682 = vmatpush1.msra.mxu0 0.0
  %683 = vmatprep.subr.mxu0 0.0
  %684 = vmatpush1.msra.mxu0 0.0
  %685 = vmatprep.subr.mxu0 0.0
  %686 = vmatpush1.msra.mxu0 0.0
  %687 = vmatprep.subr.mxu0 0.0
  %688 = vmatpush1.msra.mxu0 0.0
  %689 = vmatprep.subr.mxu0 0.0
  %690 = vmatpush1.msra.mxu0 0.0
  %691 = vmatprep.subr.mxu0 0.0
  %692 = vmatpush1.msra.mxu0 0.0
  %693 = vmatprep.subr.mxu0 0.0
  %694 = vmatpush1.msra.mxu0 0.0
  %695 = vmatprep.subr.mxu0 0.0
  %696 = vmatpush1.msra.mxu0 0.0
  %697 = vmatprep.subr.mxu0 0.0
  %698 = vmatpush1.msra.mxu0 0.0
  %699 = vmatprep.subr.mxu0 0.0
  %700 = vmatpush1.msra.mxu0 0.0
  %701 = vmatprep.subr.mxu0 0.0
  %702 = vmatpush1.msra.mxu0 0.0
  %703 = vmatprep.subr.mxu0 0.0
  %704 = vmatpush1.msra.mxu0 0.0
  %705 = vmatprep.subr.mxu0 0.0
  %706 = vmatpush1.msra.mxu0 0.0
  %707 = vmatprep.mubr.f32.mxu0 0.0
  %708 = vmatmul.mubr.f32.gmra.mrb[0].mxu0 %v638
  %v709 = vpop.f32.mrb[0].mxu0
  %v710 = vadd.f32 %v629, %v709
  %v711 = vpop.f32.mrb[0].mxu0
  %712 = vmatprep.mubr.f32.mxu0 0.0
  %713 = vmatmul.mubr.f32.gmra.mrb[0].mxu0 %v641
  %v714 = vpop.f32.mrb[0].mxu0
  %v715 = vadd.f32 %v634, %v714
  %v716 = vpop.f32.mrb[0].mxu0
  %717 = vdwg.mxu0
  %718 = vrot.lane.b32.xlu0 %v136, 112
  %v719 = vpop.permute.xlu0 %718
  %720 = vrot.lane.b32.xlu0 %v141, 112
  %v721 = vpop.permute.xlu0 %720
  %722 = vrot.lane.b32.xlu0 %v136, 80
  %v723 = vpop.permute.xlu0 %722
  %724 = vrot.lane.b32.xlu0 %v141, 80
  %v725 = vpop.permute.xlu0 %724
  %v726 = vsel %vm154, %v719, 0
  %v728 = vsel %vm154, %v721, 0
  %v730 = vsel %vm154, %v723, 0
  %v732 = vsel %vm154, %v725, 0
  %734 = vmatprep.subr.mxu0 0.0
  %735 = vmatpush1.xpose.msra.mxu0 %v730
  %736 = vmatprep.subr.mxu0 0.0
  %737 = vmatpush1.xpose.msra.mxu0 %v732
  %738 = vmatprep.subr.mxu0 0.0
  %739 = vmatpush1.xpose.msra.mxu0 0.0
  %740 = vmatprep.subr.mxu0 0.0
  %741 = vmatpush1.xpose.msra.mxu0 0.0
  %742 = vmatprep.subr.mxu0 0.0
  %743 = vmatpush1.xpose.msra.mxu0 0.0
  %744 = vmatprep.subr.mxu0 0.0
  %745 = vmatpush1.xpose.msra.mxu0 0.0
  %746 = vmatprep.subr.mxu0 0.0
  %747 = vmatpush1.xpose.msra.mxu0 0.0
  %748 = vmatprep.subr.mxu0 0.0
  %749 = vmatpush1.xpose.msra.mxu0 0.0
  %750 = vmatprep.subr.mxu0 0.0
  %751 = vmatpush1.xpose.msra.mxu0 0.0
  %752 = vmatprep.subr.mxu0 0.0
  %753 = vmatpush1.xpose.msra.mxu0 0.0
  %754 = vmatprep.subr.mxu0 0.0
  %755 = vmatpush1.xpose.msra.mxu0 0.0
  %756 = vmatprep.subr.mxu0 0.0
  %757 = vmatpush1.xpose.msra.mxu0 0.0
  %758 = vmatprep.subr.mxu0 0.0
  %759 = vmatpush1.xpose.msra.mxu0 0.0
  %760 = vmatprep.subr.mxu0 0.0
  %761 = vmatpush1.xpose.msra.mxu0 0.0
  %762 = vmatprep.subr.mxu0 0.0
  %763 = vmatpush1.xpose.msra.mxu0 0.0
  %764 = vmatprep.subr.mxu0 0.0
  %765 = vmatpush1.xpose.msra.mxu0 0.0
  %766 = vmatprep.subr.mxu0 0.0
  %767 = vmatpush1.xpose.msra.mxu0 0.0
  %768 = vmatprep.subr.mxu0 0.0
  %769 = vmatpush1.xpose.msra.mxu0 0.0
  %770 = vmatprep.subr.mxu0 0.0
  %771 = vmatpush1.xpose.msra.mxu0 0.0
  %772 = vmatprep.subr.mxu0 0.0
  %773 = vmatpush1.xpose.msra.mxu0 0.0
  %774 = vmatprep.subr.mxu0 0.0
  %775 = vmatpush1.xpose.msra.mxu0 0.0
  %776 = vmatprep.subr.mxu0 0.0
  %777 = vmatpush1.xpose.msra.mxu0 0.0
  %778 = vmatprep.subr.mxu0 0.0
  %779 = vmatpush1.xpose.msra.mxu0 0.0
  %780 = vmatprep.subr.mxu0 0.0
  %781 = vmatpush1.xpose.msra.mxu0 0.0
  %782 = vmatprep.subr.mxu0 0.0
  %783 = vmatpush1.xpose.msra.mxu0 0.0
  %784 = vmatprep.subr.mxu0 0.0
  %785 = vmatpush1.xpose.msra.mxu0 0.0
  %786 = vmatprep.subr.mxu0 0.0
  %787 = vmatpush1.xpose.msra.mxu0 0.0
  %788 = vmatprep.subr.mxu0 0.0
  %789 = vmatpush1.xpose.msra.mxu0 0.0
  %790 = vmatprep.subr.mxu0 0.0
  %791 = vmatpush1.xpose.msra.mxu0 0.0
  %792 = vmatprep.subr.mxu0 0.0
  %793 = vmatpush1.xpose.msra.mxu0 0.0
  %794 = vmatprep.subr.mxu0 0.0
  %795 = vmatpush1.xpose.msra.mxu0 0.0
  %796 = vmatprep.subr.mxu0 0.0
  %797 = vmatpush1.xpose.msra.mxu0 0.0
  %798 = vmatprep.mubr.f32.mxu0 0.0
  %799 = vmatmul.mubr.f32.gmra.mrb[0].mxu0 %v726
  %v800 = vpop.f32.mrb[0].mxu0
  %v801 = vadd.f32 0.0, %v800
  %v802 = vpop.f32.mrb[0].mxu0
  %803 = vmatprep.mubr.f32.mxu0 0.0
  %804 = vmatmul.mubr.f32.gmra.mrb[0].mxu0 %v728
  %v805 = vpop.f32.mrb[0].mxu0
  %v806 = vadd.f32 0.0, %v805
  %v807 = vpop.f32.mrb[0].mxu0
  %808 = vdwg.mxu0
  %v809 = vmul.f32 %v801, 0.35355338
  %v810 = vmul.f32 %v806, 0.35355338
  %v811 = vadd.f32 %v809, %v49
  %v812 = vadd.f32 %v810, %v50
  %v813 = vsel %vm242, %v811, -inf
  %814 = vmax.xlane.f32.xlu0 %v813
  %v815 = vpop.xlane.xlu0 %814
  %v816 = vsel %vm242, %v812, -inf
  %817 = vmax.xlane.f32.xlu0 %v816
  %v818 = vpop.xlane.xlu0 %817
  %v819 = vsub.f32 %v811, %v815
  %v820 = vsub.f32 %v812, %v818
  %v821 = vmul.f32 %v819, 1.442695
  %v822 = vpow.pop %v821
  %v823 = vmul.f32 %v820, 1.442695
  %v824 = vpow.pop %v823
  %v825 = vsel %vm242, %v822, 0.0
  %826 = vadd.xlane.f32.xlu0 %v825
  %v827 = vpop.xlane.xlu0 %826
  %v828 = vsel %vm242, %v824, 0.0
  %829 = vadd.xlane.f32.xlu0 %v828
  %v830 = vpop.xlane.xlu0 %829
  %v831 = vrcp.pop %v827
  %v832 = vrcp.pop %v830
  %v833 = vmul.f32 %v822, %v831
  %v834 = vmul.f32 %v824, %v832
  %835 = vrot.lane.b32.xlu0 %v136, 48
  %v836 = vpop.permute.xlu0 %835
  %837 = vrot.lane.b32.xlu0 %v141, 48
  %v838 = vpop.permute.xlu0 %837
  %v842 = vsel %vm242, %v833, 0
  %v845 = vsel %vm242, %v834, 0
  %847 = vmatprep.subr.mxu0 0.0
  %848 = vmatpush1.msra.mxu0 %v836
  %849 = vmatprep.subr.mxu0 0.0
  %850 = vmatpush1.msra.mxu0 %v838
  %851 = vmatprep.subr.mxu0 0.0
  %852 = vmatpush1.msra.mxu0 0.0
  %853 = vmatprep.subr.mxu0 0.0
  %854 = vmatpush1.msra.mxu0 0.0
  %855 = vmatprep.subr.mxu0 0.0
  %856 = vmatpush1.msra.mxu0 0.0
  %857 = vmatprep.subr.mxu0 0.0
  %858 = vmatpush1.msra.mxu0 0.0
  %859 = vmatprep.subr.mxu0 0.0
  %860 = vmatpush1.msra.mxu0 0.0
  %861 = vmatprep.subr.mxu0 0.0
  %862 = vmatpush1.msra.mxu0 0.0
  %863 = vmatprep.subr.mxu0 0.0
  %864 = vmatpush1.msra.mxu0 0.0
  %865 = vmatprep.subr.mxu0 0.0
  %866 = vmatpush1.msra.mxu0 0.0
  %867 = vmatprep.subr.mxu0 0.0
  %868 = vmatpush1.msra.mxu0 0.0
  %869 = vmatprep.subr.mxu0 0.0
  %870 = vmatpush1.msra.mxu0 0.0
  %871 = vmatprep.subr.mxu0 0.0
  %872 = vmatpush1.msra.mxu0 0.0
  %873 = vmatprep.subr.mxu0 0.0
  %874 = vmatpush1.msra.mxu0 0.0
  %875 = vmatprep.subr.mxu0 0.0
  %876 = vmatpush1.msra.mxu0 0.0
  %877 = vmatprep.subr.mxu0 0.0
  %878 = vmatpush1.msra.mxu0 0.0
  %879 = vmatprep.subr.mxu0 0.0
  %880 = vmatpush1.msra.mxu0 0.0
  %881 = vmatprep.subr.mxu0 0.0
  %882 = vmatpush1.msra.mxu0 0.0
  %883 = vmatprep.subr.mxu0 0.0
  %884 = vmatpush1.msra.mxu0 0.0
  %885 = vmatprep.subr.mxu0 0.0
  %886 = vmatpush1.msra.mxu0 0.0
  %887 = vmatprep.subr.mxu0 0.0
  %888 = vmatpush1.msra.mxu0 0.0
  %889 = vmatprep.subr.mxu0 0.0
  %890 = vmatpush1.msra.mxu0 0.0
  %891 = vmatprep.subr.mxu0 0.0
  %892 = vmatpush1.msra.mxu0 0.0
  %893 = vmatprep.subr.mxu0 0.0
  %894 = vmatpush1.msra.mxu0 0.0
  %895 = vmatprep.subr.mxu0 0.0
  %896 = vmatpush1.msra.mxu0 0.0
  %897 = vmatprep.subr.mxu0 0.0
  %898 = vmatpush1.msra.mxu0 0.0
  %899 = vmatprep.subr.mxu0 0.0
  %900 = vmatpush1.msra.mxu0 0.0
  %901 = vmatprep.subr.mxu0 0.0
  %902 = vmatpush1.msra.mxu0 0.0
  %903 = vmatprep.subr.mxu0 0.0
  %904 = vmatpush1.msra.mxu0 0.0
  %905 = vmatprep.subr.mxu0 0.0
  %906 = vmatpush1.msra.mxu0 0.0
  %907 = vmatprep.subr.mxu0 0.0
  %908 = vmatpush1.msra.mxu0 0.0
  %909 = vmatprep.subr.mxu0 0.0
  %910 = vmatpush1.msra.mxu0 0.0
  %911 = vmatprep.mubr.f32.mxu0 0.0
  %912 = vmatmul.mubr.f32.gmra.mrb[0].mxu0 %v842
  %v913 = vpop.f32.mrb[0].mxu0
  %v914 = vadd.f32 0.0, %v913
  %v915 = vpop.f32.mrb[0].mxu0
  %916 = vmatprep.mubr.f32.mxu0 0.0
  %917 = vmatmul.mubr.f32.gmra.mrb[0].mxu0 %v845
  %v918 = vpop.f32.mrb[0].mxu0
  %v919 = vadd.f32 0.0, %v918
  %v920 = vpop.f32.mrb[0].mxu0
  %921 = vdwg.mxu0
  %v923 = vsel %vm154, %v914, 0
  %v926 = vsel %vm154, %v919, 0
  %928 = vmatprep.subr.mxu0 0.0
  %929 = vmatpush1.msra.mxu0 %v146
  %930 = vmatprep.subr.mxu0 0.0
  %931 = vmatpush1.msra.mxu0 0.0
  %932 = vmatprep.subr.mxu0 0.0
  %933 = vmatpush1.msra.mxu0 0.0
  %934 = vmatprep.subr.mxu0 0.0
  %935 = vmatpush1.msra.mxu0 0.0
  %936 = vmatprep.subr.mxu0 0.0
  %937 = vmatpush1.msra.mxu0 0.0
  %938 = vmatprep.subr.mxu0 0.0
  %939 = vmatpush1.msra.mxu0 0.0
  %940 = vmatprep.subr.mxu0 0.0
  %941 = vmatpush1.msra.mxu0 0.0
  %942 = vmatprep.subr.mxu0 0.0
  %943 = vmatpush1.msra.mxu0 0.0
  %944 = vmatprep.subr.mxu0 0.0
  %945 = vmatpush1.msra.mxu0 0.0
  %946 = vmatprep.subr.mxu0 0.0
  %947 = vmatpush1.msra.mxu0 0.0
  %948 = vmatprep.subr.mxu0 0.0
  %949 = vmatpush1.msra.mxu0 0.0
  %950 = vmatprep.subr.mxu0 0.0
  %951 = vmatpush1.msra.mxu0 0.0
  %952 = vmatprep.subr.mxu0 0.0
  %953 = vmatpush1.msra.mxu0 0.0
  %954 = vmatprep.subr.mxu0 0.0
  %955 = vmatpush1.msra.mxu0 0.0
  %956 = vmatprep.subr.mxu0 0.0
  %957 = vmatpush1.msra.mxu0 0.0
  %958 = vmatprep.subr.mxu0 0.0
  %959 = vmatpush1.msra.mxu0 0.0
  %960 = vmatprep.subr.mxu0 0.0
  %961 = vmatpush1.msra.mxu0 0.0
  %962 = vmatprep.subr.mxu0 0.0
  %963 = vmatpush1.msra.mxu0 0.0
  %964 = vmatprep.subr.mxu0 0.0
  %965 = vmatpush1.msra.mxu0 0.0
  %966 = vmatprep.subr.mxu0 0.0
  %967 = vmatpush1.msra.mxu0 0.0
  %968 = vmatprep.subr.mxu0 0.0
  %969 = vmatpush1.msra.mxu0 0.0
  %970 = vmatprep.subr.mxu0 0.0
  %971 = vmatpush1.msra.mxu0 0.0
  %972 = vmatprep.subr.mxu0 0.0
  %973 = vmatpush1.msra.mxu0 0.0
  %974 = vmatprep.subr.mxu0 0.0
  %975 = vmatpush1.msra.mxu0 0.0
  %976 = vmatprep.subr.mxu0 0.0
  %977 = vmatpush1.msra.mxu0 0.0
  %978 = vmatprep.subr.mxu0 0.0
  %979 = vmatpush1.msra.mxu0 0.0
  %980 = vmatprep.subr.mxu0 0.0
  %981 = vmatpush1.msra.mxu0 0.0
  %982 = vmatprep.subr.mxu0 0.0
  %983 = vmatpush1.msra.mxu0 0.0
  %984 = vmatprep.subr.mxu0 0.0
  %985 = vmatpush1.msra.mxu0 0.0
  %986 = vmatprep.subr.mxu0 0.0
  %987 = vmatpush1.msra.mxu0 0.0
  %988 = vmatprep.subr.mxu0 0.0
  %989 = vmatpush1.msra.mxu0 0.0
  %990 = vmatprep.subr.mxu0 0.0
  %991 = vmatpush1.msra.mxu0 0.0
  %992 = vmatprep.mubr.f32.mxu0 0.0
  %993 = vmatmul.mubr.f32.gmra.mrb[0].mxu0 %v923
  %v994 = vpop.f32.mrb[0].mxu0
  %v995 = vadd.f32 0.0, %v994
  %v996 = vpop.f32.mrb[0].mxu0
  %997 = vmatprep.mubr.f32.mxu0 0.0
  %998 = vmatmul.mubr.f32.gmra.mrb[0].mxu0 %v926
  %v999 = vpop.f32.mrb[0].mxu0
  %v1000 = vadd.f32 0.0, %v999
  %v1001 = vpop.f32.mrb[0].mxu0
  %1002 = vdwg.mxu0
  %v1003 = vadd.f32 %v710, %v995
  %v1004 = vadd.f32 %v715, %v1000
  %1005 = vrot.lane.b32.xlu0 %v136, 104
  %v1006 = vpop.permute.xlu0 %1005
  %1007 = vrot.lane.b32.xlu0 %v141, 104
  %v1008 = vpop.permute.xlu0 %1007
  %1009 = vrot.lane.b32.xlu0 %v136, 72
  %v1010 = vpop.permute.xlu0 %1009
  %1011 = vrot.lane.b32.xlu0 %v141, 72
  %v1012 = vpop.permute.xlu0 %1011
  %v1013 = vsel %vm154, %v1006, 0
  %v1015 = vsel %vm154, %v1008, 0
  %v1017 = vsel %vm154, %v1010, 0
  %v1019 = vsel %vm154, %v1012, 0
  %1021 = vmatprep.subr.mxu0 0.0
  %1022 = vmatpush1.xpose.msra.mxu0 %v1017
  %1023 = vmatprep.subr.mxu0 0.0
  %1024 = vmatpush1.xpose.msra.mxu0 %v1019
  %1025 = vmatprep.subr.mxu0 0.0
  %1026 = vmatpush1.xpose.msra.mxu0 0.0
  %1027 = vmatprep.subr.mxu0 0.0
  %1028 = vmatpush1.xpose.msra.mxu0 0.0
  %1029 = vmatprep.subr.mxu0 0.0
  %1030 = vmatpush1.xpose.msra.mxu0 0.0
  %1031 = vmatprep.subr.mxu0 0.0
  %1032 = vmatpush1.xpose.msra.mxu0 0.0
  %1033 = vmatprep.subr.mxu0 0.0
  %1034 = vmatpush1.xpose.msra.mxu0 0.0
  %1035 = vmatprep.subr.mxu0 0.0
  %1036 = vmatpush1.xpose.msra.mxu0 0.0
  %1037 = vmatprep.subr.mxu0 0.0
  %1038 = vmatpush1.xpose.msra.mxu0 0.0
  %1039 = vmatprep.subr.mxu0 0.0
  %1040 = vmatpush1.xpose.msra.mxu0 0.0
  %1041 = vmatprep.subr.mxu0 0.0
  %1042 = vmatpush1.xpose.msra.mxu0 0.0
  %1043 = vmatprep.subr.mxu0 0.0
  %1044 = vmatpush1.xpose.msra.mxu0 0.0
  %1045 = vmatprep.subr.mxu0 0.0
  %1046 = vmatpush1.xpose.msra.mxu0 0.0
  %1047 = vmatprep.subr.mxu0 0.0
  %1048 = vmatpush1.xpose.msra.mxu0 0.0
  %1049 = vmatprep.subr.mxu0 0.0
  %1050 = vmatpush1.xpose.msra.mxu0 0.0
  %1051 = vmatprep.subr.mxu0 0.0
  %1052 = vmatpush1.xpose.msra.mxu0 0.0
  %1053 = vmatprep.subr.mxu0 0.0
  %1054 = vmatpush1.xpose.msra.mxu0 0.0
  %1055 = vmatprep.subr.mxu0 0.0
  %1056 = vmatpush1.xpose.msra.mxu0 0.0
  %1057 = vmatprep.subr.mxu0 0.0
  %1058 = vmatpush1.xpose.msra.mxu0 0.0
  %1059 = vmatprep.subr.mxu0 0.0
  %1060 = vmatpush1.xpose.msra.mxu0 0.0
  %1061 = vmatprep.subr.mxu0 0.0
  %1062 = vmatpush1.xpose.msra.mxu0 0.0
  %1063 = vmatprep.subr.mxu0 0.0
  %1064 = vmatpush1.xpose.msra.mxu0 0.0
  %1065 = vmatprep.subr.mxu0 0.0
  %1066 = vmatpush1.xpose.msra.mxu0 0.0
  %1067 = vmatprep.subr.mxu0 0.0
  %1068 = vmatpush1.xpose.msra.mxu0 0.0
  %1069 = vmatprep.subr.mxu0 0.0
  %1070 = vmatpush1.xpose.msra.mxu0 0.0
  %1071 = vmatprep.subr.mxu0 0.0
  %1072 = vmatpush1.xpose.msra.mxu0 0.0
  %1073 = vmatprep.subr.mxu0 0.0
  %1074 = vmatpush1.xpose.msra.mxu0 0.0
  %1075 = vmatprep.subr.mxu0 0.0
  %1076 = vmatpush1.xpose.msra.mxu0 0.0
  %1077 = vmatprep.subr.mxu0 0.0
  %1078 = vmatpush1.xpose.msra.mxu0 0.0
  %1079 = vmatprep.subr.mxu0 0.0
  %1080 = vmatpush1.xpose.msra.mxu0 0.0
  %1081 = vmatprep.subr.mxu0 0.0
  %1082 = vmatpush1.xpose.msra.mxu0 0.0
  %1083 = vmatprep.subr.mxu0 0.0
  %1084 = vmatpush1.xpose.msra.mxu0 0.0
  %1085 = vmatprep.mubr.f32.mxu0 0.0
  %1086 = vmatmul.mubr.f32.gmra.mrb[0].mxu0 %v1013
  %v1087 = vpop.f32.mrb[0].mxu0
  %v1088 = vadd.f32 0.0, %v1087
  %v1089 = vpop.f32.mrb[0].mxu0
  %1090 = vmatprep.mubr.f32.mxu0 0.0
  %1091 = vmatmul.mubr.f32.gmra.mrb[0].mxu0 %v1015
  %v1092 = vpop.f32.mrb[0].mxu0
  %v1093 = vadd.f32 0.0, %v1092
  %v1094 = vpop.f32.mrb[0].mxu0
  %1095 = vdwg.mxu0
  %v1096 = vmul.f32 %v1088, 0.35355338
  %v1097 = vmul.f32 %v1093, 0.35355338
  %v1098 = vadd.f32 %v1096, %v49
  %v1099 = vadd.f32 %v1097, %v50
  %v1100 = vsel %vm242, %v1098, -inf
  %1101 = vmax.xlane.f32.xlu0 %v1100
  %v1102 = vpop.xlane.xlu0 %1101
  %v1103 = vsel %vm242, %v1099, -inf
  %1104 = vmax.xlane.f32.xlu0 %v1103
  %v1105 = vpop.xlane.xlu0 %1104
  %v1106 = vsub.f32 %v1098, %v1102
  %v1107 = vsub.f32 %v1099, %v1105
  %v1108 = vmul.f32 %v1106, 1.442695
  %v1109 = vpow.pop %v1108
  %v1110 = vmul.f32 %v1107, 1.442695
  %v1111 = vpow.pop %v1110
  %v1112 = vsel %vm242, %v1109, 0.0
  %1113 = vadd.xlane.f32.xlu0 %v1112
  %v1114 = vpop.xlane.xlu0 %1113
  %v1115 = vsel %vm242, %v1111, 0.0
  %1116 = vadd.xlane.f32.xlu0 %v1115
  %v1117 = vpop.xlane.xlu0 %1116
  %v1118 = vrcp.pop %v1114
  %v1119 = vrcp.pop %v1117
  %v1120 = vmul.f32 %v1109, %v1118
  %v1121 = vmul.f32 %v1111, %v1119
  %1122 = vrot.lane.b32.xlu0 %v136, 40
  %v1123 = vpop.permute.xlu0 %1122
  %1124 = vrot.lane.b32.xlu0 %v141, 40
  %v1125 = vpop.permute.xlu0 %1124
  %v1129 = vsel %vm242, %v1120, 0
  %v1132 = vsel %vm242, %v1121, 0
  %1134 = vmatprep.subr.mxu0 0.0
  %1135 = vmatpush1.msra.mxu0 %v1123
  %1136 = vmatprep.subr.mxu0 0.0
  %1137 = vmatpush1.msra.mxu0 %v1125
  %1138 = vmatprep.subr.mxu0 0.0
  %1139 = vmatpush1.msra.mxu0 0.0
  %1140 = vmatprep.subr.mxu0 0.0
  %1141 = vmatpush1.msra.mxu0 0.0
  %1142 = vmatprep.subr.mxu0 0.0
  %1143 = vmatpush1.msra.mxu0 0.0
  %1144 = vmatprep.subr.mxu0 0.0
  %1145 = vmatpush1.msra.mxu0 0.0
  %1146 = vmatprep.subr.mxu0 0.0
  %1147 = vmatpush1.msra.mxu0 0.0
  %1148 = vmatprep.subr.mxu0 0.0
  %1149 = vmatpush1.msra.mxu0 0.0
  %1150 = vmatprep.subr.mxu0 0.0
  %1151 = vmatpush1.msra.mxu0 0.0
  %1152 = vmatprep.subr.mxu0 0.0
  %1153 = vmatpush1.msra.mxu0 0.0
  %1154 = vmatprep.subr.mxu0 0.0
  %1155 = vmatpush1.msra.mxu0 0.0
  %1156 = vmatprep.subr.mxu0 0.0
  %1157 = vmatpush1.msra.mxu0 0.0
  %1158 = vmatprep.subr.mxu0 0.0
  %1159 = vmatpush1.msra.mxu0 0.0
  %1160 = vmatprep.subr.mxu0 0.0
  %1161 = vmatpush1.msra.mxu0 0.0
  %1162 = vmatprep.subr.mxu0 0.0
  %1163 = vmatpush1.msra.mxu0 0.0
  %1164 = vmatprep.subr.mxu0 0.0
  %1165 = vmatpush1.msra.mxu0 0.0
  %1166 = vmatprep.subr.mxu0 0.0
  %1167 = vmatpush1.msra.mxu0 0.0
  %1168 = vmatprep.subr.mxu0 0.0
  %1169 = vmatpush1.msra.mxu0 0.0
  %1170 = vmatprep.subr.mxu0 0.0
  %1171 = vmatpush1.msra.mxu0 0.0
  %1172 = vmatprep.subr.mxu0 0.0
  %1173 = vmatpush1.msra.mxu0 0.0
  %1174 = vmatprep.subr.mxu0 0.0
  %1175 = vmatpush1.msra.mxu0 0.0
  %1176 = vmatprep.subr.mxu0 0.0
  %1177 = vmatpush1.msra.mxu0 0.0
  %1178 = vmatprep.subr.mxu0 0.0
  %1179 = vmatpush1.msra.mxu0 0.0
  %1180 = vmatprep.subr.mxu0 0.0
  %1181 = vmatpush1.msra.mxu0 0.0
  %1182 = vmatprep.subr.mxu0 0.0
  %1183 = vmatpush1.msra.mxu0 0.0
  %1184 = vmatprep.subr.mxu0 0.0
  %1185 = vmatpush1.msra.mxu0 0.0
  %1186 = vmatprep.subr.mxu0 0.0
  %1187 = vmatpush1.msra.mxu0 0.0
  %1188 = vmatprep.subr.mxu0 0.0
  %1189 = vmatpush1.msra.mxu0 0.0
  %1190 = vmatprep.subr.mxu0 0.0
  %1191 = vmatpush1.msra.mxu0 0.0
  %1192 = vmatprep.subr.mxu0 0.0
  %1193 = vmatpush1.msra.mxu0 0.0
  %1194 = vmatprep.subr.mxu0 0.0
  %1195 = vmatpush1.msra.mxu0 0.0
  %1196 = vmatprep.subr.mxu0 0.0
  %1197 = vmatpush1.msra.mxu0 0.0
  %1198 = vmatprep.mubr.f32.mxu0 0.0
  %1199 = vmatmul.mubr.f32.gmra.mrb[0].mxu0 %v1129
  %v1200 = vpop.f32.mrb[0].mxu0
  %v1201 = vadd.f32 0.0, %v1200
  %v1202 = vpop.f32.mrb[0].mxu0
  %1203 = vmatprep.mubr.f32.mxu0 0.0
  %1204 = vmatmul.mubr.f32.gmra.mrb[0].mxu0 %v1132
  %v1205 = vpop.f32.mrb[0].mxu0
  %v1206 = vadd.f32 0.0, %v1205
  %v1207 = vpop.f32.mrb[0].mxu0
  %1208 = vdwg.mxu0
  %v1210 = vsel %vm154, %v1201, 0
  %v1213 = vsel %vm154, %v1206, 0
  %1215 = vmatprep.subr.mxu0 0.0
  %1216 = vmatpush1.msra.mxu0 %v147
  %1217 = vmatprep.subr.mxu0 0.0
  %1218 = vmatpush1.msra.mxu0 0.0
  %1219 = vmatprep.subr.mxu0 0.0
  %1220 = vmatpush1.msra.mxu0 0.0
  %1221 = vmatprep.subr.mxu0 0.0
  %1222 = vmatpush1.msra.mxu0 0.0
  %1223 = vmatprep.subr.mxu0 0.0
  %1224 = vmatpush1.msra.mxu0 0.0
  %1225 = vmatprep.subr.mxu0 0.0
  %1226 = vmatpush1.msra.mxu0 0.0
  %1227 = vmatprep.subr.mxu0 0.0
  %1228 = vmatpush1.msra.mxu0 0.0
  %1229 = vmatprep.subr.mxu0 0.0
  %1230 = vmatpush1.msra.mxu0 0.0
  %1231 = vmatprep.subr.mxu0 0.0
  %1232 = vmatpush1.msra.mxu0 0.0
  %1233 = vmatprep.subr.mxu0 0.0
  %1234 = vmatpush1.msra.mxu0 0.0
  %1235 = vmatprep.subr.mxu0 0.0
  %1236 = vmatpush1.msra.mxu0 0.0
  %1237 = vmatprep.subr.mxu0 0.0
  %1238 = vmatpush1.msra.mxu0 0.0
  %1239 = vmatprep.subr.mxu0 0.0
  %1240 = vmatpush1.msra.mxu0 0.0
  %1241 = vmatprep.subr.mxu0 0.0
  %1242 = vmatpush1.msra.mxu0 0.0
  %1243 = vmatprep.subr.mxu0 0.0
  %1244 = vmatpush1.msra.mxu0 0.0
  %1245 = vmatprep.subr.mxu0 0.0
  %1246 = vmatpush1.msra.mxu0 0.0
  %1247 = vmatprep.subr.mxu0 0.0
  %1248 = vmatpush1.msra.mxu0 0.0
  %1249 = vmatprep.subr.mxu0 0.0
  %1250 = vmatpush1.msra.mxu0 0.0
  %1251 = vmatprep.subr.mxu0 0.0
  %1252 = vmatpush1.msra.mxu0 0.0
  %1253 = vmatprep.subr.mxu0 0.0
  %1254 = vmatpush1.msra.mxu0 0.0
  %1255 = vmatprep.subr.mxu0 0.0
  %1256 = vmatpush1.msra.mxu0 0.0
  %1257 = vmatprep.subr.mxu0 0.0
  %1258 = vmatpush1.msra.mxu0 0.0
  %1259 = vmatprep.subr.mxu0 0.0
  %1260 = vmatpush1.msra.mxu0 0.0
  %1261 = vmatprep.subr.mxu0 0.0
  %1262 = vmatpush1.msra.mxu0 0.0
  %1263 = vmatprep.subr.mxu0 0.0
  %1264 = vmatpush1.msra.mxu0 0.0
  %1265 = vmatprep.subr.mxu0 0.0
  %1266 = vmatpush1.msra.mxu0 0.0
  %1267 = vmatprep.subr.mxu0 0.0
  %1268 = vmatpush1.msra.mxu0 0.0
  %1269 = vmatprep.subr.mxu0 0.0
  %1270 = vmatpush1.msra.mxu0 0.0
  %1271 = vmatprep.subr.mxu0 0.0
  %1272 = vmatpush1.msra.mxu0 0.0
  %1273 = vmatprep.subr.mxu0 0.0
  %1274 = vmatpush1.msra.mxu0 0.0
  %1275 = vmatprep.subr.mxu0 0.0
  %1276 = vmatpush1.msra.mxu0 0.0
  %1277 = vmatprep.subr.mxu0 0.0
  %1278 = vmatpush1.msra.mxu0 0.0
  %1279 = vmatprep.mubr.f32.mxu0 0.0
  %1280 = vmatmul.mubr.f32.gmra.mrb[0].mxu0 %v1210
  %v1281 = vpop.f32.mrb[0].mxu0
  %v1282 = vadd.f32 0.0, %v1281
  %v1283 = vpop.f32.mrb[0].mxu0
  %1284 = vmatprep.mubr.f32.mxu0 0.0
  %1285 = vmatmul.mubr.f32.gmra.mrb[0].mxu0 %v1213
  %v1286 = vpop.f32.mrb[0].mxu0
  %v1287 = vadd.f32 0.0, %v1286
  %v1288 = vpop.f32.mrb[0].mxu0
  %1289 = vdwg.mxu0
  %v1290 = vadd.f32 %v1003, %v1282
  %v1291 = vadd.f32 %v1004, %v1287
  %v1292 = vld [vmem:[%s5] sm:$0x1]
  %v1294 = vlaneseq
  %v1295 = vshrl.u32 %v1294, 7
  %v1296 = vsub.s32 0, %v1295
  %v1297 = vrot.slane %v1292, %v1296
  %v1299 = vadd.f32 %v1290, %v1297
  %v1300 = vadd.f32 %v1291, %v1297
  %v1301 = vadd.f32 %v47, %v1299
  %v1302 = vadd.f32 %v48, %v1300
  %v1303 = vld [vmem:[%s6] sm:$0x1]
  %v1304 = vld [vmem:[%s7] sm:$0x1]
  %v1305 = vsel %vm62, %v1301, 0.0
  %1306 = vadd.xlane.f32.xlu0 %v1305
  %v1307 = vpop.xlane.xlu0 %1306
  %v1308 = vsel %vm62, %v1302, 0.0
  %1309 = vadd.xlane.f32.xlu0 %v1308
  %v1310 = vpop.xlane.xlu0 %1309
  %v1311 = vrcp.pop 32.0
  %v1312 = vmul.f32 %v1307, %v1311
  %v1313 = vmul.f32 %v1310, %v1311
  %v1314 = vsub.f32 %v1301, %v1312
  %v1315 = vsub.f32 %v1302, %v1313
  %v1316 = vmul.f32 %v1314, %v1314
  %v1317 = vmul.f32 %v1315, %v1315
  %v1318 = vsel %vm62, %v1316, 0.0
  %1319 = vadd.xlane.f32.xlu0 %v1318
  %v1320 = vpop.xlane.xlu0 %1319
  %v1321 = vsel %vm62, %v1317, 0.0
  %1322 = vadd.xlane.f32.xlu0 %v1321
  %v1323 = vpop.xlane.xlu0 %1322
  %v1324 = vmul.f32 %v1320, %v1311
  %v1325 = vmul.f32 %v1323, %v1311
  %v1326 = vadd.f32 %v1324, 1e-12
  %v1327 = vadd.f32 %v1325, 1e-12
  %v1328 = vrsqrt.pop %v1326
  %v1329 = vrsqrt.pop %v1327
  %v1330 = vmul.f32 %v1314, %v1328
  %v1331 = vmul.f32 %v1315, %v1329
  %v1333 = vlaneseq
  %v1334 = vshrl.u32 %v1333, 7
  %v1335 = vsub.s32 0, %v1334
  %v1336 = vrot.slane %v1303, %v1335
  %v1338 = vmul.f32 %v1330, %v1336
  %v1339 = vmul.f32 %v1331, %v1336
  %v1341 = vlaneseq
  %v1342 = vshrl.u32 %v1341, 7
  %v1343 = vsub.s32 0, %v1342
  %v1344 = vrot.slane %v1304, %v1343
  %v1346 = vadd.f32 %v1338, %v1344
  %v1347 = vadd.f32 %v1339, %v1344
  %v1348 = vld [vmem:[%s8] sm:$0xff]
  %v1349 = vld [vmem:[%s8 + $0x8] sm:$0xff]
  %v1350 = vld [vmem:[%s8 + $0x10] sm:$0xff]
  %v1351 = vld [vmem:[%s8 + $0x18] sm:$0xff]
  %v1352 = vld [vmem:[%s9] sm:$0x1]
  %v1354 = vlaneseq
  %v1355 = vshrl.u32 %v1354, 7
  %v1356 = vsub.s32 0, %v1355
  %v1357 = vrot.slane %v1352, %v1356
  %v1360 = vsel %vm62, %v1346, 0
  %v1363 = vsel %vm62, %v1347, 0
  %1365 = vmatprep.subr.mxu0 0.0
  %1366 = vmatpush1.msra.mxu0 %v1348
  %1367 = vmatprep.subr.mxu0 0.0
  %1368 = vmatpush1.msra.mxu0 %v1349
  %1369 = vmatprep.subr.mxu0 0.0
  %1370 = vmatpush1.msra.mxu0 %v1350
  %1371 = vmatprep.subr.mxu0 0.0
  %1372 = vmatpush1.msra.mxu0 %v1351
  %1373 = vmatprep.subr.mxu0 0.0
  %1374 = vmatpush1.msra.mxu0 0.0
  %1375 = vmatprep.subr.mxu0 0.0
  %1376 = vmatpush1.msra.mxu0 0.0
  %1377 = vmatprep.subr.mxu0 0.0
  %1378 = vmatpush1.msra.mxu0 0.0
  %1379 = vmatprep.subr.mxu0 0.0
  %1380 = vmatpush1.msra.mxu0 0.0
  %1381 = vmatprep.subr.mxu0 0.0
  %1382 = vmatpush1.msra.mxu0 0.0
  %1383 = vmatprep.subr.mxu0 0.0
  %1384 = vmatpush1.msra.mxu0 0.0
  %1385 = vmatprep.subr.mxu0 0.0
  %1386 = vmatpush1.msra.mxu0 0.0
  %1387 = vmatprep.subr.mxu0 0.0
  %1388 = vmatpush1.msra.mxu0 0.0
  %1389 = vmatprep.subr.mxu0 0.0
  %1390 = vmatpush1.msra.mxu0 0.0
  %1391 = vmatprep.subr.mxu0 0.0
  %1392 = vmatpush1.msra.mxu0 0.0
  %1393 = vmatprep.subr.mxu0 0.0
  %1394 = vmatpush1.msra.mxu0 0.0
  %1395 = vmatprep.subr.mxu0 0.0
  %1396 = vmatpush1.msra.mxu0 0.0
  %1397 = vmatprep.subr.mxu0 0.0
  %1398 = vmatpush1.msra.mxu0 0.0
  %1399 = vmatprep.subr.mxu0 0.0
  %1400 = vmatpush1.msra.mxu0 0.0
  %1401 = vmatprep.subr.mxu0 0.0
  %1402 = vmatpush1.msra.mxu0 0.0
  %1403 = vmatprep.subr.mxu0 0.0
  %1404 = vmatpush1.msra.mxu0 0.0
  %1405 = vmatprep.subr.mxu0 0.0
  %1406 = vmatpush1.msra.mxu0 0.0
  %1407 = vmatprep.subr.mxu0 0.0
  %1408 = vmatpush1.msra.mxu0 0.0
  %1409 = vmatprep.subr.mxu0 0.0
  %1410 = vmatpush1.msra.mxu0 0.0
  %1411 = vmatprep.subr.mxu0 0.0
  %1412 = vmatpush1.msra.mxu0 0.0
  %1413 = vmatprep.subr.mxu0 0.0
  %1414 = vmatpush1.msra.mxu0 0.0
  %1415 = vmatprep.subr.mxu0 0.0
  %1416 = vmatpush1.msra.mxu0 0.0
  %1417 = vmatprep.subr.mxu0 0.0
  %1418 = vmatpush1.msra.mxu0 0.0
  %1419 = vmatprep.subr.mxu0 0.0
  %1420 = vmatpush1.msra.mxu0 0.0
  %1421 = vmatprep.subr.mxu0 0.0
  %1422 = vmatpush1.msra.mxu0 0.0
  %1423 = vmatprep.subr.mxu0 0.0
  %1424 = vmatpush1.msra.mxu0 0.0
  %1425 = vmatprep.subr.mxu0 0.0
  %1426 = vmatpush1.msra.mxu0 0.0
  %1427 = vmatprep.subr.mxu0 0.0
  %1428 = vmatpush1.msra.mxu0 0.0
  %1429 = vmatprep.mubr.f32.mxu0 0.0
  %1430 = vmatmul.mubr.f32.gmra.mrb[0].mxu0 %v1360
  %v1431 = vpop.f32.mrb[0].mxu0
  %v1432 = vadd.f32 %v1357, %v1431
  %v1433 = vpop.f32.mrb[0].mxu0
  %1434 = vmatprep.mubr.f32.mxu0 0.0
  %1435 = vmatmul.mubr.f32.gmra.mrb[0].mxu0 %v1363
  %v1436 = vpop.f32.mrb[0].mxu0
  %v1437 = vadd.f32 %v1357, %v1436
  %v1438 = vpop.f32.mrb[0].mxu0
  %1439 = vdwg.mxu0
  %v1440 = vmul.f32 %v1432, 0.5
  %v1441 = vmul.f32 %v1437, 0.5
  %v1442 = vmul.f32 %v1432, 0.70710677
  %v1443 = vmul.f32 %v1437, 0.70710677
  %v1444 = verf.f32.pop %v1442
  %v1445 = verf.f32.pop %v1443
  %v1446 = vadd.f32 %v1444, 1.0
  %v1447 = vadd.f32 %v1445, 1.0
  %v1448 = vmul.f32 %v1440, %v1446
  %v1449 = vmul.f32 %v1441, %v1447
  %v1450 = vld [vmem:[%s10] sm:$0xff]
  %v1451 = vld [vmem:[%s10 + $0x8] sm:$0xff]
  %v1452 = vld [vmem:[%s10 + $0x10] sm:$0xff]
  %v1453 = vld [vmem:[%s10 + $0x18] sm:$0xff]
  %v1454 = vld [vmem:[%s10 + $0x20] sm:$0xff]
  %v1455 = vld [vmem:[%s10 + $0x28] sm:$0xff]
  %v1456 = vld [vmem:[%s10 + $0x30] sm:$0xff]
  %v1457 = vld [vmem:[%s10 + $0x38] sm:$0xff]
  %v1458 = vld [vmem:[%s11] sm:$0x1]
  %v1460 = vlaneseq
  %v1461 = vshrl.u32 %v1460, 7
  %v1462 = vsub.s32 0, %v1461
  %v1463 = vrot.slane %v1458, %v1462
  %vm1465 = vcmask 523264
  %v1467 = vsel %vm1465, %v1448, 0
  %v1470 = vsel %vm1465, %v1449, 0
  %1472 = vmatprep.subr.mxu0 0.0
  %1473 = vmatpush1.msra.mxu0 %v1450
  %1474 = vmatprep.subr.mxu0 0.0
  %1475 = vmatpush1.msra.mxu0 %v1451
  %1476 = vmatprep.subr.mxu0 0.0
  %1477 = vmatpush1.msra.mxu0 %v1452
  %1478 = vmatprep.subr.mxu0 0.0
  %1479 = vmatpush1.msra.mxu0 %v1453
  %1480 = vmatprep.subr.mxu0 0.0
  %1481 = vmatpush1.msra.mxu0 %v1454
  %1482 = vmatprep.subr.mxu0 0.0
  %1483 = vmatpush1.msra.mxu0 %v1455
  %1484 = vmatprep.subr.mxu0 0.0
  %1485 = vmatpush1.msra.mxu0 %v1456
  %1486 = vmatprep.subr.mxu0 0.0
  %1487 = vmatpush1.msra.mxu0 %v1457
  %1488 = vmatprep.subr.mxu0 0.0
  %1489 = vmatpush1.msra.mxu0 0.0
  %1490 = vmatprep.subr.mxu0 0.0
  %1491 = vmatpush1.msra.mxu0 0.0
  %1492 = vmatprep.subr.mxu0 0.0
  %1493 = vmatpush1.msra.mxu0 0.0
  %1494 = vmatprep.subr.mxu0 0.0
  %1495 = vmatpush1.msra.mxu0 0.0
  %1496 = vmatprep.subr.mxu0 0.0
  %1497 = vmatpush1.msra.mxu0 0.0
  %1498 = vmatprep.subr.mxu0 0.0
  %1499 = vmatpush1.msra.mxu0 0.0
  %1500 = vmatprep.subr.mxu0 0.0
  %1501 = vmatpush1.msra.mxu0 0.0
  %1502 = vmatprep.subr.mxu0 0.0
  %1503 = vmatpush1.msra.mxu0 0.0
  %1504 = vmatprep.subr.mxu0 0.0
  %1505 = vmatpush1.msra.mxu0 0.0
  %1506 = vmatprep.subr.mxu0 0.0
  %1507 = vmatpush1.msra.mxu0 0.0
  %1508 = vmatprep.subr.mxu0 0.0
  %1509 = vmatpush1.msra.mxu0 0.0
  %1510 = vmatprep.subr.mxu0 0.0
  %1511 = vmatpush1.msra.mxu0 0.0
  %1512 = vmatprep.subr.mxu0 0.0
  %1513 = vmatpush1.msra.mxu0 0.0
  %1514 = vmatprep.subr.mxu0 0.0
  %1515 = vmatpush1.msra.mxu0 0.0
  %1516 = vmatprep.subr.mxu0 0.0
  %1517 = vmatpush1.msra.mxu0 0.0
  %1518 = vmatprep.subr.mxu0 0.0
  %1519 = vmatpush1.msra.mxu0 0.0
  %1520 = vmatprep.subr.mxu0 0.0
  %1521 = vmatpush1.msra.mxu0 0.0
  %1522 = vmatprep.subr.mxu0 0.0
  %1523 = vmatpush1.msra.mxu0 0.0
  %1524 = vmatprep.subr.mxu0 0.0
  %1525 = vmatpush1.msra.mxu0 0.0
  %1526 = vmatprep.subr.mxu0 0.0
  %1527 = vmatpush1.msra.mxu0 0.0
  %1528 = vmatprep.subr.mxu0 0.0
  %1529 = vmatpush1.msra.mxu0 0.0
  %1530 = vmatprep.subr.mxu0 0.0
  %1531 = vmatpush1.msra.mxu0 0.0
  %1532 = vmatprep.subr.mxu0 0.0
  %1533 = vmatpush1.msra.mxu0 0.0
  %1534 = vmatprep.subr.mxu0 0.0
  %1535 = vmatpush1.msra.mxu0 0.0
  %1536 = vmatprep.mubr.f32.mxu0 0.0
  %1537 = vmatmul.mubr.f32.gmra.mrb[0].mxu0 %v1467
  %v1538 = vpop.f32.mrb[0].mxu0
  %v1539 = vadd.f32 %v1463, %v1538
  %v1540 = vpop.f32.mrb[0].mxu0
  %1541 = vmatprep.mubr.f32.mxu0 0.0
  %1542 = vmatmul.mubr.f32.gmra.mrb[0].mxu0 %v1470
  %v1543 = vpop.f32.mrb[0].mxu0
  %v1544 = vadd.f32 %v1463, %v1543
  %v1545 = vpop.f32.mrb[0].mxu0
  %1546 = vdwg.mxu0
  %v1547 = vadd.f32 %v1346, %v1539
  %v1548 = vadd.f32 %v1347, %v1544
  %v1549 = vld [vmem:[%s12] sm:$0x1]
  %v1550 = vld [vmem:[%s13] sm:$0x1]
  %v1551 = vsel %vm62, %v1547, 0.0
  %1552 = vadd.xlane.f32.xlu0 %v1551
  %v1553 = vpop.xlane.xlu0 %1552
  %v1554 = vsel %vm62, %v1548, 0.0
  %1555 = vadd.xlane.f32.xlu0 %v1554
  %v1556 = vpop.xlane.xlu0 %1555
  %v1557 = vmul.f32 %v1553, %v1311
  %v1558 = vmul.f32 %v1556, %v1311
  %v1559 = vsub.f32 %v1547, %v1557
  %v1560 = vsub.f32 %v1548, %v1558
  %v1561 = vmul.f32 %v1559, %v1559
  %v1562 = vmul.f32 %v1560, %v1560
  %v1563 = vsel %vm62, %v1561, 0.0
  %1564 = vadd.xlane.f32.xlu0 %v1563
  %v1565 = vpop.xlane.xlu0 %1564
  %v1566 = vsel %vm62, %v1562, 0.0
  %1567 = vadd.xlane.f32.xlu0 %v1566
  %v1568 = vpop.xlane.xlu0 %1567
  %v1569 = vmul.f32 %v1565, %v1311
  %v1570 = vmul.f32 %v1568, %v1311
  %v1571 = vadd.f32 %v1569, 1e-12
  %v1572 = vadd.f32 %v1570, 1e-12
  %v1573 = vrsqrt.pop %v1571
  %v1574 = vrsqrt.pop %v1572
  %v1575 = vmul.f32 %v1559, %v1573
  %v1576 = vmul.f32 %v1560, %v1574
  %v1578 = vlaneseq
  %v1579 = vshrl.u32 %v1578, 7
  %v1580 = vsub.s32 0, %v1579
  %v1581 = vrot.slane %v1549, %v1580
  %v1583 = vmul.f32 %v1575, %v1581
  %v1584 = vmul.f32 %v1576, %v1581
  %v1586 = vlaneseq
  %v1587 = vshrl.u32 %v1586, 7
  %v1588 = vsub.s32 0, %v1587
  %v1589 = vrot.slane %v1550, %v1588
  %v1591 = vadd.f32 %v1583, %v1589
  %v1592 = vadd.f32 %v1584, %v1589
  %1593 = vst.msk [vmem:[%s14] sm:$0xff] %vm62, %v1591
  %1594 = vst.msk [vmem:[%s14 + $0x8] sm:$0xff] %vm62, %v1592
  // Predicated region
  $region58: #{_lambda_.4} parent=0 // pred_check
    _
  $region59: #{_lambda_.4} parent=0 // pred_check_branch
    %1596 = sbr.rel (0) target = $region61
  $region60: #{_lambda_.4} parent=0 // pred_region
    _
  $region61: #{_lambda_.4} parent=0 // pred_fallthru
    _
  // Predicated region
  $region62: #{_lambda_.4} parent=0 // pred_check
    _
  $region63: #{_lambda_.4} parent=0 // pred_check_branch
    %1598 = sbr.rel (0) target = $region65
  $region64: #{_lambda_.4} parent=0 // pred_region
    _
  $region65: #{_lambda_.4} parent=0 // pred_fallthru
    _

</llo_original>
